<compile_context>
chip_gen: v5e
topology: v5e:2x2
jax: 0.10.0
libtpu: 0.0.40
codegen_flags: <defaults>
</compile_context>

<pallas_src>
import functools

import jax
import jax.numpy as jnp
import numpy as np
from jax.experimental import pallas as pl
from jax.experimental.pallas import tpu as pltpu


def _round_up(a, m):
    return (a + m - 1) // m * m


# Cached "does this Pallas build accept pipeline_mode=pl.Buffered(1)?" flag.
_RESIDENT_SINGLE_BUFFER = [True]


def _conv_fused_kernel(w_ref, b_ref, x_ref, xh_ref, o_ref, xs_ref, *,
                       tap_specs, tl, cp, precision):
    # w_ref : (C_out, kk*Cp)   fused block-diagonal per-tap weight (VMEM resident)
    # b_ref : (C_out, 128) f32 bias (lane-broadcast inside the kernel)
    # x_ref : (S2, Cp, TL)     main lane tile of the flattened (polyphase) input
    # xh_ref: (S2, Cp, H128)   halo: the H128 lanes directly after this tile
    # o_ref : (C_out, TL)
    # xs_ref: (kk*Cp, TL)      stacked tap-window operand (scratch)
    comps = sorted({c for c, _ in tap_specs})
    x_main = {c: x_ref[c] for c in comps}
    x_halo = {c: xh_ref[c] for c in sorted({c for c, o in tap_specs if o > 0})}

    # Assemble the stacked contraction operand: one (Cp, TL) slab per tap, written once,
    # full lane width, sublane-aligned rows (Cp is padded to the sublane tile).
    # TODO(synk): reuse k column-shifted copies across the k vertical taps (needs the row
    # pitch Wd rounded to a 128 multiple to pay off; wasteful for small images).
    for t, (c, off) in enumerate(tap_specs):
        r0 = t * cp
        if off == 0:
            win = x_main[c]
        elif off >= tl:                      # degenerate tiny-tile case: off == tl == H128
            win = x_halo[c][:, :tl]
        else:
            win = jnp.concatenate([x_main[c][:, off:], x_halo[c][:, :off]], axis=-1)
        xs_ref[r0:r0 + cp, :] = win

    # Single fused matmul: K = kk*Cp instead of kk matmuls with K = C_in.
    # TODO(synk): on v5e, stream the stacked operand through vregs in K-chunks instead of
    # a full VMEM staging buffer (1 store slot).
    acc = jnp.dot(w_ref[...], xs_ref[...],
                  preferred_element_type=jnp.float32, precision=precision)
    o_ref[...] = (acc + b_ref[:, :1]).astype(o_ref.dtype)


def sparse_2x4_conv2d_forward(x, Ws, bs, *, kernel_size, stride, padding, groups,
                              mxu_dtype=None, lane_tile_target=None):
    """Forward of Sparse2x4Conv2d (non-gumbel path; covers blocked & non-blocked math).

    x : (N, C_in, H, W)
    Ws: (G, Fout_g, Fin_g) per-group weight blocks, Fin_g = (C_in//G)*k*k (nn.Unfold order)
    bs: (G, Fout_g)        per-group bias (zeros when use_bias=False -> zero_bias path)
    mxu_dtype: optional matmul dtype (e.g. jnp.bfloat16 on v6e/v7x); accumulation is f32.
    returns (N, C_out, H_out, W_out)
    """
    # TODO(synk): gumbel_2x4 stochastic 2:4 masking is a training-time reparametrization
    # (W * sampled_mask before the same matmul) and is not implemented here.
    N, C_in, H, W = x.shape
    k, s, p, G = kernel_size, stride, padding, groups
    assert C_in % G == 0
    Cg = C_in // G
    Fout_g = Ws.shape[1]
    C_out = G * Fout_g
    kk = k * k
    assert Ws.shape[2] == Cg * kk

    out_dtype = x.dtype
    cdt = jnp.dtype(mxu_dtype) if mxu_dtype is not None else jnp.dtype(x.dtype)
    isz_c = cdt.itemsize
    isz_o = jnp.dtype(out_dtype).itemsize
    sub = {4: 8, 2: 16, 1: 32}.get(isz_c, 8)       # sublane tile for the compute dtype
    Cp = _round_up(C_in, sub)                       # channel-padded C_in (zeros)
    Kf = kk * Cp                                    # fused contraction length

    Ho = (H + 2 * p - k) // s + 1
    Wo = (W + 2 * p - k) // s + 1
    Hp, Wp = H + 2 * p, W + 2 * p
    Hd, Wd = -(-Hp // s), -(-Wp // s)               # polyphase (per-stride-residue) grid
    S2 = s * s

    # per-tap (polyphase component, flat lane offset); row pitch = Wd ("garbage columns")
    tap_specs = tuple(
        ((i % s) * s + (j % s), (i // s) * Wd + (j // s))
        for i in range(k) for j in range(k)
    )
    max_off = max(off for _, off in tap_specs)

    L_flat = Ho * Wd                                # valid rows; cols >= Wo are garbage
    H128 = max(128, _round_up(max_off, 128))        # halo width / TL granularity

    # ---- generation-aware VMEM budget and lane-tile selection
    try:
        cap = int(getattr(pltpu.get_tpu_info(), "vmem_capacity_bytes", 0)) or (64 << 20)
    except Exception:
        cap = 64 << 20                              # v7x-safe fallback
    budget = cap * 3 // 4
    if lane_tile_target is None:
        lane_tile_target = 4096 if budget >= (64 << 20) else 2048

    def vmem_bytes(tl):
        # Conservative: residents counted double-buffered even when Buffered(1) applies,
        # so the fallback path never exceeds the limit. Plus the fused-operand scratch.
        return (2 * S2 * Cp * tl * isz_c            # main x tile (double buffered)
                + 2 * S2 * Cp * H128 * isz_c        # halo tile
                + 2 * C_out * Kf * isz_c            # fused weight
                + 2 * C_out * 128 * 4               # bias
                + 2 * C_out * tl * isz_o            # output tile
                + Kf * tl * isz_c)                  # stacked-operand scratch

    TL = max(H128, _round_up(min(lane_tile_target, L_flat), H128))
    while TL > H128 and vmem_bytes(TL) > budget:
        TL -= H128
    if vmem_bytes(TL) > budget:
        raise ValueError(
            "Sparse2x4Conv2d Pallas kernel: the resident fused weight "
            f"({C_out}x{Kf} {cdt.name}) plus minimum tiles exceeds the VMEM budget "
            f"({vmem_bytes(TL)} > {budget} bytes). "
            "TODO(synk): add a tap/C_in-chunk reduction grid axis ('arbitrary', f32 "
            "accumulator with pl.when init/finalize) or un-fuse groups onto a grid axis.")

    # megacore (v7x): keep the total grid size even when possible
    L_tiles = -(-L_flat // TL)
    if (N * L_tiles) % 2 == 1:
        for cand in range(TL, H128 - 1, -H128):
            if (-(-L_flat // cand)) % 2 == 0:
                TL, L_tiles = cand, -(-L_flat // cand)
                break

    L_pad = L_tiles * TL
    XL = L_pad + H128                               # flat length incl. halo tail
    R = TL // H128                                  # halo block-index stride

    # ---- plain-JAX pre-pass: pad (+ zero channel pad to Cp) and flatten, pitch = Wd
    xc = x.astype(cdt)
    if s == 1:
        # single fused pad, no polyphase transpose (S2 == 1)
        rows_needed = -(-XL // Wp)
        extra_rows = max(0, rows_needed - Hp)
        xp = jnp.pad(xc, ((0, 0), (0, Cp - C_in), (p, p + extra_rows), (p, p)))
        x_k = xp.reshape(N, 1, Cp, (Hp + extra_rows) * Wp)[..., :XL]
    else:
        xp = jnp.pad(xc, ((0, 0), (0, Cp - C_in),
                          (p, p + Hd * s - Hp), (p, p + Wd * s - Wp)))
        xpoly = xp.reshape(N, Cp, Hd, s, Wd, s).transpose(0, 3, 5, 1, 2, 4)
        x_flat = xpoly.reshape(N, S2, Cp, Hd * Wd)
        if Hd * Wd >= XL:
            x_k = x_flat[..., :XL]                  # trailing elements are never read
        else:
            x_k = jnp.pad(x_flat, ((0, 0), (0, 0), (0, 0), (0, XL - Hd * Wd)))
    # TODO(synk): fold the conv zero-padding into the kernel (masked halo) to remove even
    # this single extra HBM pass over the input.

    # ---- fused block-diagonal per-tap weight (C_out, kk*Cp) and small f32 bias block
    W5 = Ws.reshape(G, Fout_g, Cg, k, k).astype(cdt)
    Wt = jnp.transpose(W5, (3, 4, 0, 1, 2)).reshape(kk, G, Fout_g, Cg)
    W_taps = jnp.zeros((kk, C_out, Cp), dtype=cdt)
    for g in range(G):
        W_taps = W_taps.at[:, g * Fout_g:(g + 1) * Fout_g,
                           g * Cg:(g + 1) * Cg].set(Wt[:, g])
    W_fused = jnp.transpose(W_taps, (1, 0, 2)).reshape(C_out, Kf)
    b2d = jnp.broadcast_to(bs.reshape(C_out, 1).astype(jnp.float32), (C_out, 128))

    precision = jax.lax.Precision.HIGHEST if cdt == jnp.float32 else None
    kernel = functools.partial(_conv_fused_kernel, tap_specs=tap_specs, tl=TL, cp=Cp,
                               precision=precision)
    vmem_limit = int(min(budget, max(32 << 20,
                                     vmem_bytes(TL) + (vmem_bytes(TL) >> 2) + (2 << 20))))

    def build(single_buffer):
        res_kw = dict(pipeline_mode=pl.Buffered(1)) if single_buffer else {}
        # TODO(synk): when TL had to be shrunk far below target, consider
        # pipeline_mode=pl.Buffered(3) on the x-tile spec (gate on the VMEM budget).
        return pl.pallas_call(
            kernel,
            out_shape=jax.ShapeDtypeStruct((N, C_out, L_pad), out_dtype),
            grid=(N, L_tiles),
            in_specs=[
                pl.BlockSpec((C_out, Kf), lambda n, l: (0, 0), **res_kw),      # resident
                pl.BlockSpec((C_out, 128), lambda n, l: (0, 0), **res_kw),     # resident
                pl.BlockSpec((pl.Squeezed(), S2, Cp, TL),
                             lambda n, l: (n, 0, 0, l)),
                pl.BlockSpec((pl.Squeezed(), S2, Cp, H128),
                             lambda n, l: (n, 0, 0, (l + 1) * R)),             # halo
            ],
            out_specs=pl.BlockSpec((pl.Squeezed(), C_out, TL), lambda n, l: (n, 0, l)),
            scratch_shapes=[pltpu.VMEM((Kf, TL), cdt)],
            compiler_params=pltpu.CompilerParams(
                dimension_semantics=("parallel", "parallel"),
                vmem_limit_bytes=vmem_limit,
            ),
        )

    args = (W_fused, b2d, x_k, x_k)
    if _RESIDENT_SINGLE_BUFFER[0]:
        try:
            out = build(True)(*args)
        except Exception:
            _RESIDENT_SINGLE_BUFFER[0] = False      # this build rejects Buffered(1)
            out = build(False)(*args)
    else:
        out = build(False)(*args)

    # drop lane padding + garbage columns; already in (N, C_out, L) layout
    y = out[:, :, :L_flat].reshape(N, C_out, Ho, Wd)[:, :, :, :Wo]
    return y


def _reference(x, Ws, bs, *, kernel_size, stride, padding, groups):
    G = groups
    N, C_in, H, W = x.shape
    Cg = C_in // G
    Fout_g = Ws.shape[1]
    C_out = G * Fout_g
    w_conv = Ws.reshape(G, Fout_g, Cg, kernel_size, kernel_size).reshape(
        C_out, Cg, kernel_size, kernel_size)
    y = jax.lax.conv_general_dilated(
        x, w_conv, window_strides=(stride, stride),
        padding=[(padding, padding), (padding, padding)],
        dimension_numbers=("NCHW", "OIHW", "NCHW"),
        feature_group_count=G,
        precision=jax.lax.Precision.HIGHEST)
    return y + bs.reshape(-1)[None, :, None, None]


if __name__ == "__main__":
    key = jax.random.PRNGKey(0)
    kx, kw, kb, kx2, kw2 = jax.random.split(key, 5)

    def q(a):  # snap test data to the bf16 grid so f32 and bf16 MXU paths are near-exact
        return a.astype(jnp.bfloat16).astype(jnp.float32)

    # config 1: module defaults (k=3, stride=1, padding=1), groups=2, with bias
    N, C_in, H, W = 2, 4, 16, 16
    C_out, k, s, p, G = 8, 3, 1, 1, 2
    Fin_g, Fout_g = (C_in // G) * k * k, C_out // G
    x = q(jax.random.normal(kx, (N, C_in, H, W), dtype=jnp.float32))
    Ws = q(jax.random.normal(kw, (G, Fout_g, Fin_g), dtype=jnp.float32))
    bs = jax.random.normal(kb, (G, Fout_g), dtype=jnp.float32)

    y = jax.block_until_ready(sparse_2x4_conv2d_forward(
        x, Ws, bs, kernel_size=k, stride=s, padding=p, groups=G))
    y_ref = _reference(x, Ws, bs, kernel_size=k, stride=s, padding=p, groups=G)
    assert y.shape == (N, C_out, H, W)
    np.testing.assert_allclose(np.asarray(y), np.asarray(y_ref), rtol=5e-4, atol=5e-4)

    # same config through the bf16-MXU path (recommended on v6e/v7x); f32 accumulation
    y_bf = jax.block_until_ready(sparse_2x4_conv2d_forward(
        x, Ws, bs, kernel_size=k, stride=s, padding=p, groups=G,
        mxu_dtype=jnp.bfloat16))
    np.testing.assert_allclose(np.asarray(y_bf), np.asarray(y_ref), rtol=2e-3, atol=2e-3)

    # config 2: stride=2, groups=3, odd spatial size, use_bias=False (zero_bias path)
    N2, C_in2, H2, W2 = 2, 6, 9, 9
    C_out2, k2, s2, p2, G2 = 6, 3, 2, 1, 3
    x2 = q(jax.random.normal(kx2, (N2, C_in2, H2, W2), dtype=jnp.float32))
    Ws2 = q(jax.random.normal(
        kw2, (G2, C_out2 // G2, (C_in2 // G2) * k2 * k2), dtype=jnp.float32))
    bs2 = jnp.zeros((G2, C_out2 // G2), dtype=jnp.float32)

    y2 = jax.block_until_ready(sparse_2x4_conv2d_forward(
        x2, Ws2, bs2, kernel_size=k2, stride=s2, padding=p2, groups=G2))
    y2_ref = _reference(x2, Ws2, bs2, kernel_size=k2, stride=s2, padding=p2, groups=G2)
    Ho2 = (H2 + 2 * p2 - k2) // s2 + 1
    assert y2.shape == (N2, C_out2, Ho2, Ho2)
    np.testing.assert_allclose(np.asarray(y2), np.asarray(y2_ref), rtol=5e-4, atol=5e-4)

    print("KERNEL_OK")
</pallas_src>

<mosaic_0001>
module attributes {stable_mosaic.version = 11 : i64} {
  func.func @_conv_fused_kernel(%arg0: i32, %arg1: i32, %arg2: memref<8x72xf32, #tpu.memory_space<vmem>>, %arg3: memref<8x128xf32, #tpu.memory_space<vmem>>, %arg4: memref<1x1x8x384xf32, #tpu.memory_space<vmem>>, %arg5: memref<1x1x8x128xf32, #tpu.memory_space<vmem>>, %arg6: memref<1x8x384xf32, #tpu.memory_space<vmem>>, %arg7: memref<72x384xf32, #tpu.memory_space<vmem>>) attributes {dimension_semantics = [#tpu.dimension_semantics<parallel>, #tpu.dimension_semantics<parallel>], iteration_bounds = array<i64: 2, 1>, scalar_prefetch = 0 : i64, scratch_operands = 1 : i64, tpu.core_type = #tpu.core_type<tc>, window_params = [{pipeline_mode = #tpu.pipeline_mode<synchronous>, transform_indices = @transform_0, window_bounds = array<i64: 8, 72>}, {pipeline_mode = #tpu.pipeline_mode<synchronous>, transform_indices = @transform_1, window_bounds = array<i64: 8, 128>}, {transform_indices = @transform_2, window_bounds = array<i64: 1, 1, 8, 384>}, {transform_indices = @transform_3, window_bounds = array<i64: 1, 1, 8, 128>}, {transform_indices = @transform_4, window_bounds = array<i64: 1, 8, 384>}]} {
    %c0 = arith.constant 0 : index
    %c0_0 = arith.constant 0 : index
    %c0_1 = arith.constant 0 : index
    %c0_2 = arith.constant 0 : index
    %0 = vector.load %arg4[%c0, %c0_0, %c0_1, %c0_2] : memref<1x1x8x384xf32, #tpu.memory_space<vmem>>, vector<1x1x8x384xf32>
    %1 = vector.shape_cast %0 : vector<1x1x8x384xf32> to vector<8x384xf32>
    %c0_3 = arith.constant 0 : index
    %c0_4 = arith.constant 0 : index
    %c0_5 = arith.constant 0 : index
    %c0_6 = arith.constant 0 : index
    %2 = vector.load %arg5[%c0_3, %c0_4, %c0_5, %c0_6] : memref<1x1x8x128xf32, #tpu.memory_space<vmem>>, vector<1x1x8x128xf32>
    %3 = vector.shape_cast %2 : vector<1x1x8x128xf32> to vector<8x128xf32>
    %c0_7 = arith.constant 0 : index
    %c0_8 = arith.constant 0 : index
    %4 = vector.load %arg7[%c0_7, %c0_8] : memref<72x384xf32, #tpu.memory_space<vmem>>, vector<8x384xf32>
    tpu.vector_store %arg7[%c0_7, %c0_8], %1 {strides = array<i32>} : memref<72x384xf32, #tpu.memory_space<vmem>>, vector<8x384xf32>,
    %5 = vector.extract_strided_slice %1 {offsets = [0, 1], sizes = [8, 383], strides = [1, 1]} : vector<8x384xf32> to vector<8x383xf32>
    %6 = vector.extract_strided_slice %3 {offsets = [0, 0], sizes = [8, 1], strides = [1, 1]} : vector<8x128xf32> to vector<8x1xf32>
    %7 = tpu.concatenate %5, %6 in 1 : vector<8x383xf32>, vector<8x1xf32> -> vector<8x384xf32>
    %c8 = arith.constant 8 : index
    %c0_9 = arith.constant 0 : index
    %8 = vector.load %arg7[%c8, %c0_9] : memref<72x384xf32, #tpu.memory_space<vmem>>, vector<8x384xf32>
    tpu.vector_store %arg7[%c8, %c0_9], %7 {strides = array<i32>} : memref<72x384xf32, #tpu.memory_space<vmem>>, vector<8x384xf32>,
    %9 = vector.extract_strided_slice %1 {offsets = [0, 2], sizes = [8, 382], strides = [1, 1]} : vector<8x384xf32> to vector<8x382xf32>
    %10 = vector.extract_strided_slice %3 {offsets = [0, 0], sizes = [8, 2], strides = [1, 1]} : vector<8x128xf32> to vector<8x2xf32>
    %11 = tpu.concatenate %9, %10 in 1 : vector<8x382xf32>, vector<8x2xf32> -> vector<8x384xf32>
    %c16 = arith.constant 16 : index
    %c0_10 = arith.constant 0 : index
    %12 = vector.load %arg7[%c16, %c0_10] : memref<72x384xf32, #tpu.memory_space<vmem>>, vector<8x384xf32>
    tpu.vector_store %arg7[%c16, %c0_10], %11 {strides = array<i32>} : memref<72x384xf32, #tpu.memory_space<vmem>>, vector<8x384xf32>,
    %13 = vector.extract_strided_slice %1 {offsets = [0, 18], sizes = [8, 366], strides = [1, 1]} : vector<8x384xf32> to vector<8x366xf32>
    %14 = vector.extract_strided_slice %3 {offsets = [0, 0], sizes = [8, 18], strides = [1, 1]} : vector<8x128xf32> to vector<8x18xf32>
    %15 = tpu.concatenate %13, %14 in 1 : vector<8x366xf32>, vector<8x18xf32> -> vector<8x384xf32>
    %c24 = arith.constant 24 : index
    %c0_11 = arith.constant 0 : index
    %16 = vector.load %arg7[%c24, %c0_11] : memref<72x384xf32, #tpu.memory_space<vmem>>, vector<8x384xf32>
    tpu.vector_store %arg7[%c24, %c0_11], %15 {strides = array<i32>} : memref<72x384xf32, #tpu.memory_space<vmem>>, vector<8x384xf32>,
    %17 = vector.extract_strided_slice %1 {offsets = [0, 19], sizes = [8, 365], strides = [1, 1]} : vector<8x384xf32> to vector<8x365xf32>
    %18 = vector.extract_strided_slice %3 {offsets = [0, 0], sizes = [8, 19], strides = [1, 1]} : vector<8x128xf32> to vector<8x19xf32>
    %19 = tpu.concatenate %17, %18 in 1 : vector<8x365xf32>, vector<8x19xf32> -> vector<8x384xf32>
    %c32 = arith.constant 32 : index
    %c0_12 = arith.constant 0 : index
    %20 = vector.load %arg7[%c32, %c0_12] : memref<72x384xf32, #tpu.memory_space<vmem>>, vector<8x384xf32>
    tpu.vector_store %arg7[%c32, %c0_12], %19 {strides = array<i32>} : memref<72x384xf32, #tpu.memory_space<vmem>>, vector<8x384xf32>,
    %21 = vector.extract_strided_slice %1 {offsets = [0, 20], sizes = [8, 364], strides = [1, 1]} : vector<8x384xf32> to vector<8x364xf32>
    %22 = vector.extract_strided_slice %3 {offsets = [0, 0], sizes = [8, 20], strides = [1, 1]} : vector<8x128xf32> to vector<8x20xf32>
    %23 = tpu.concatenate %21, %22 in 1 : vector<8x364xf32>, vector<8x20xf32> -> vector<8x384xf32>
    %c40 = arith.constant 40 : index
    %c0_13 = arith.constant 0 : index
    %24 = vector.load %arg7[%c40, %c0_13] : memref<72x384xf32, #tpu.memory_space<vmem>>, vector<8x384xf32>
    tpu.vector_store %arg7[%c40, %c0_13], %23 {strides = array<i32>} : memref<72x384xf32, #tpu.memory_space<vmem>>, vector<8x384xf32>,
    %25 = vector.extract_strided_slice %1 {offsets = [0, 36], sizes = [8, 348], strides = [1, 1]} : vector<8x384xf32> to vector<8x348xf32>
    %26 = vector.extract_strided_slice %3 {offsets = [0, 0], sizes = [8, 36], strides = [1, 1]} : vector<8x128xf32> to vector<8x36xf32>
    %27 = tpu.concatenate %25, %26 in 1 : vector<8x348xf32>, vector<8x36xf32> -> vector<8x384xf32>
    %c48 = arith.constant 48 : index
    %c0_14 = arith.constant 0 : index
    %28 = vector.load %arg7[%c48, %c0_14] : memref<72x384xf32, #tpu.memory_space<vmem>>, vector<8x384xf32>
    tpu.vector_store %arg7[%c48, %c0_14], %27 {strides = array<i32>} : memref<72x384xf32, #tpu.memory_space<vmem>>, vector<8x384xf32>,
    %29 = vector.extract_strided_slice %1 {offsets = [0, 37], sizes = [8, 347], strides = [1, 1]} : vector<8x384xf32> to vector<8x347xf32>
    %30 = vector.extract_strided_slice %3 {offsets = [0, 0], sizes = [8, 37], strides = [1, 1]} : vector<8x128xf32> to vector<8x37xf32>
    %31 = tpu.concatenate %29, %30 in 1 : vector<8x347xf32>, vector<8x37xf32> -> vector<8x384xf32>
    %c56 = arith.constant 56 : index
    %c0_15 = arith.constant 0 : index
    %32 = vector.load %arg7[%c56, %c0_15] : memref<72x384xf32, #tpu.memory_space<vmem>>, vector<8x384xf32>
    tpu.vector_store %arg7[%c56, %c0_15], %31 {strides = array<i32>} : memref<72x384xf32, #tpu.memory_space<vmem>>, vector<8x384xf32>,
    %33 = vector.extract_strided_slice %1 {offsets = [0, 38], sizes = [8, 346], strides = [1, 1]} : vector<8x384xf32> to vector<8x346xf32>
    %34 = vector.extract_strided_slice %3 {offsets = [0, 0], sizes = [8, 38], strides = [1, 1]} : vector<8x128xf32> to vector<8x38xf32>
    %35 = tpu.concatenate %33, %34 in 1 : vector<8x346xf32>, vector<8x38xf32> -> vector<8x384xf32>
    %c64 = arith.constant 64 : index
    %c0_16 = arith.constant 0 : index
    %36 = vector.load %arg7[%c64, %c0_16] : memref<72x384xf32, #tpu.memory_space<vmem>>, vector<8x384xf32>
    tpu.vector_store %arg7[%c64, %c0_16], %35 {strides = array<i32>} : memref<72x384xf32, #tpu.memory_space<vmem>>, vector<8x384xf32>,
    %c0_17 = arith.constant 0 : index
    %c0_18 = arith.constant 0 : index
    %37 = vector.load %arg2[%c0_17, %c0_18] : memref<8x72xf32, #tpu.memory_space<vmem>>, vector<8x72xf32>
    %c0_19 = arith.constant 0 : index
    %c0_20 = arith.constant 0 : index
    %38 = vector.load %arg7[%c0_19, %c0_20] : memref<72x384xf32, #tpu.memory_space<vmem>>, vector<72x384xf32>
    %cst = arith.constant dense<0.000000e+00> : vector<8x384xf32>
    %39 = tpu.matmul %37, %38, %cst {dimension_numbers = #tpu.dot_dimension_numbers<[1], [0], [0], [1], [0, 0, 1, 1], [], []>, precision = #tpu.contract_precision<fp32>} : vector<8x72xf32>, vector<72x384xf32>, vector<8x384xf32> -> vector<8x384xf32>
    %c0_21 = arith.constant 0 : index
    %c0_22 = arith.constant 0 : index
    %40 = vector.load %arg3[%c0_21, %c0_22] : memref<8x128xf32, #tpu.memory_space<vmem>>, vector<8x1xf32>
    %41 = vector.broadcast %40 : vector<8x1xf32> to vector<8x384xf32>
    %42 = arith.addf %39, %41 : vector<8x384xf32>
    %c0_23 = arith.constant 0 : index
    %c0_24 = arith.constant 0 : index
    %c0_25 = arith.constant 0 : index
    %43 = vector.load %arg6[%c0_23, %c0_24, %c0_25] : memref<1x8x384xf32, #tpu.memory_space<vmem>>, vector<1x8x384xf32>
    %44 = vector.shape_cast %43 : vector<1x8x384xf32> to vector<8x384xf32>
    %45 = vector.shape_cast %42 : vector<8x384xf32> to vector<1x8x384xf32>
    tpu.vector_store %arg6[%c0_23, %c0_24, %c0_25], %45 {strides = array<i32>} : memref<1x8x384xf32, #tpu.memory_space<vmem>>, vector<1x8x384xf32>,
    return
  }
  func.func @transform_0(%arg0: i32, %arg1: i32) -> (i32, i32) {
    %c0_i32 = arith.constant 0 : i32
    %c0_i32_0 = arith.constant 0 : i32
    %c0_i32_1 = arith.constant 0 : i32
    return %c0_i32, %c0_i32_0 : i32, i32
  }
  func.func @transform_1(%arg0: i32, %arg1: i32) -> (i32, i32) {
    %c0_i32 = arith.constant 0 : i32
    %c0_i32_0 = arith.constant 0 : i32
    %c0_i32_1 = arith.constant 0 : i32
    return %c0_i32, %c0_i32_0 : i32, i32
  }
  func.func @transform_2(%arg0: i32, %arg1: i32) -> (i32, i32, i32, i32) {
    %c0_i32 = arith.constant 0 : i32
    %c0_i32_0 = arith.constant 0 : i32
    %c0_i32_1 = arith.constant 0 : i32
    return %arg0, %c0_i32, %c0_i32_0, %arg1 : i32, i32, i32, i32
  }
  func.func @transform_3(%arg0: i32, %arg1: i32) -> (i32, i32, i32, i32) {
    %c1_i32 = arith.constant 1 : i32
    %0 = arith.addi %arg1, %c1_i32 : i32
    %c3_i32 = arith.constant 3 : i32
    %1 = arith.muli %0, %c3_i32 : i32
    %c0_i32 = arith.constant 0 : i32
    %c0_i32_0 = arith.constant 0 : i32
    %c0_i32_1 = arith.constant 0 : i32
    return %arg0, %c0_i32, %c0_i32_0, %1 : i32, i32, i32, i32
  }
  func.func @transform_4(%arg0: i32, %arg1: i32) -> (i32, i32, i32) {
    %c0_i32 = arith.constant 0 : i32
    %c0_i32_0 = arith.constant 0 : i32
    return %arg0, %c0_i32, %arg1 : i32, i32, i32
  }
}

module attributes {stable_mosaic.version = 11 : i64} {
  func.func @_conv_fused_kernel(%arg0: i32, %arg1: i32, %arg2: memref<8x72xf32, #tpu.memory_space<vmem>>, %arg3: memref<8x128xf32, #tpu.memory_space<vmem>>, %arg4: memref<1x1x8x384xf32, #tpu.memory_space<vmem>>, %arg5: memref<1x1x8x128xf32, #tpu.memory_space<vmem>>, %arg6: memref<1x8x384xf32, #tpu.memory_space<vmem>>, %arg7: memref<72x384xf32, #tpu.memory_space<vmem>>) attributes {dimension_semantics = [#tpu.dimension_semantics<parallel>, #tpu.dimension_semantics<parallel>], iteration_bounds = array<i64: 2, 1>, scalar_prefetch = 0 : i64, scratch_operands = 1 : i64, tpu.core_type = #tpu.core_type<tc>, window_params = [{pipeline_mode = #tpu.pipeline_mode<synchronous>, transform_indices = @transform_0, window_bounds = array<i64: 8, 72>}, {pipeline_mode = #tpu.pipeline_mode<synchronous>, transform_indices = @transform_1, window_bounds = array<i64: 8, 128>}, {transform_indices = @transform_2, window_bounds = array<i64: 1, 1, 8, 384>}, {transform_indices = @transform_3, window_bounds = array<i64: 1, 1, 8, 128>}, {transform_indices = @transform_4, window_bounds = array<i64: 1, 8, 384>}]} {
    %c0 = arith.constant 0 : index
    %c0_0 = arith.constant 0 : index
    %c0_1 = arith.constant 0 : index
    %c0_2 = arith.constant 0 : index
    %0 = vector.load %arg4[%c0, %c0_0, %c0_1, %c0_2] : memref<1x1x8x384xf32, #tpu.memory_space<vmem>>, vector<1x1x8x384xf32>
    %1 = vector.shape_cast %0 : vector<1x1x8x384xf32> to vector<8x384xf32>
    %c0_3 = arith.constant 0 : index
    %c0_4 = arith.constant 0 : index
    %c0_5 = arith.constant 0 : index
    %c0_6 = arith.constant 0 : index
    %2 = vector.load %arg5[%c0_3, %c0_4, %c0_5, %c0_6] : memref<1x1x8x128xf32, #tpu.memory_space<vmem>>, vector<1x1x8x128xf32>
    %3 = vector.shape_cast %2 : vector<1x1x8x128xf32> to vector<8x128xf32>
    %c0_7 = arith.constant 0 : index
    %c0_8 = arith.constant 0 : index
    %4 = vector.load %arg7[%c0_7, %c0_8] : memref<72x384xf32, #tpu.memory_space<vmem>>, vector<8x384xf32>
    tpu.vector_store %arg7[%c0_7, %c0_8], %1 {strides = array<i32>} : memref<72x384xf32, #tpu.memory_space<vmem>>, vector<8x384xf32>,
    %5 = vector.extract_strided_slice %1 {offsets = [0, 1], sizes = [8, 383], strides = [1, 1]} : vector<8x384xf32> to vector<8x383xf32>
    %6 = vector.extract_strided_slice %3 {offsets = [0, 0], sizes = [8, 1], strides = [1, 1]} : vector<8x128xf32> to vector<8x1xf32>
    %7 = tpu.concatenate %5, %6 in 1 : vector<8x383xf32>, vector<8x1xf32> -> vector<8x384xf32>
    %c8 = arith.constant 8 : index
    %c0_9 = arith.constant 0 : index
    %8 = vector.load %arg7[%c8, %c0_9] : memref<72x384xf32, #tpu.memory_space<vmem>>, vector<8x384xf32>
    tpu.vector_store %arg7[%c8, %c0_9], %7 {strides = array<i32>} : memref<72x384xf32, #tpu.memory_space<vmem>>, vector<8x384xf32>,
    %9 = vector.extract_strided_slice %1 {offsets = [0, 2], sizes = [8, 382], strides = [1, 1]} : vector<8x384xf32> to vector<8x382xf32>
    %10 = vector.extract_strided_slice %3 {offsets = [0, 0], sizes = [8, 2], strides = [1, 1]} : vector<8x128xf32> to vector<8x2xf32>
    %11 = tpu.concatenate %9, %10 in 1 : vector<8x382xf32>, vector<8x2xf32> -> vector<8x384xf32>
    %c16 = arith.constant 16 : index
    %c0_10 = arith.constant 0 : index
    %12 = vector.load %arg7[%c16, %c0_10] : memref<72x384xf32, #tpu.memory_space<vmem>>, vector<8x384xf32>
    tpu.vector_store %arg7[%c16, %c0_10], %11 {strides = array<i32>} : memref<72x384xf32, #tpu.memory_space<vmem>>, vector<8x384xf32>,
    %13 = vector.extract_strided_slice %1 {offsets = [0, 18], sizes = [8, 366], strides = [1, 1]} : vector<8x384xf32> to vector<8x366xf32>
    %14 = vector.extract_strided_slice %3 {offsets = [0, 0], sizes = [8, 18], strides = [1, 1]} : vector<8x128xf32> to vector<8x18xf32>
    %15 = tpu.concatenate %13, %14 in 1 : vector<8x366xf32>, vector<8x18xf32> -> vector<8x384xf32>
    %c24 = arith.constant 24 : index
    %c0_11 = arith.constant 0 : index
    %16 = vector.load %arg7[%c24, %c0_11] : memref<72x384xf32, #tpu.memory_space<vmem>>, vector<8x384xf32>
    tpu.vector_store %arg7[%c24, %c0_11], %15 {strides = array<i32>} : memref<72x384xf32, #tpu.memory_space<vmem>>, vector<8x384xf32>,
    %17 = vector.extract_strided_slice %1 {offsets = [0, 19], sizes = [8, 365], strides = [1, 1]} : vector<8x384xf32> to vector<8x365xf32>
    %18 = vector.extract_strided_slice %3 {offsets = [0, 0], sizes = [8, 19], strides = [1, 1]} : vector<8x128xf32> to vector<8x19xf32>
    %19 = tpu.concatenate %17, %18 in 1 : vector<8x365xf32>, vector<8x19xf32> -> vector<8x384xf32>
    %c32 = arith.constant 32 : index
    %c0_12 = arith.constant 0 : index
    %20 = vector.load %arg7[%c32, %c0_12] : memref<72x384xf32, #tpu.memory_space<vmem>>, vector<8x384xf32>
    tpu.vector_store %arg7[%c32, %c0_12], %19 {strides = array<i32>} : memref<72x384xf32, #tpu.memory_space<vmem>>, vector<8x384xf32>,
    %21 = vector.extract_strided_slice %1 {offsets = [0, 20], sizes = [8, 364], strides = [1, 1]} : vector<8x384xf32> to vector<8x364xf32>
    %22 = vector.extract_strided_slice %3 {offsets = [0, 0], sizes = [8, 20], strides = [1, 1]} : vector<8x128xf32> to vector<8x20xf32>
    %23 = tpu.concatenate %21, %22 in 1 : vector<8x364xf32>, vector<8x20xf32> -> vector<8x384xf32>
    %c40 = arith.constant 40 : index
    %c0_13 = arith.constant 0 : index
    %24 = vector.load %arg7[%c40, %c0_13] : memref<72x384xf32, #tpu.memory_space<vmem>>, vector<8x384xf32>
    tpu.vector_store %arg7[%c40, %c0_13], %23 {strides = array<i32>} : memref<72x384xf32, #tpu.memory_space<vmem>>, vector<8x384xf32>,
    %25 = vector.extract_strided_slice %1 {offsets = [0, 36], sizes = [8, 348], strides = [1, 1]} : vector<8x384xf32> to vector<8x348xf32>
    %26 = vector.extract_strided_slice %3 {offsets = [0, 0], sizes = [8, 36], strides = [1, 1]} : vector<8x128xf32> to vector<8x36xf32>
    %27 = tpu.concatenate %25, %26 in 1 : vector<8x348xf32>, vector<8x36xf32> -> vector<8x384xf32>
    %c48 = arith.constant 48 : index
    %c0_14 = arith.constant 0 : index
    %28 = vector.load %arg7[%c48, %c0_14] : memref<72x384xf32, #tpu.memory_space<vmem>>, vector<8x384xf32>
    tpu.vector_store %arg7[%c48, %c0_14], %27 {strides = array<i32>} : memref<72x384xf32, #tpu.memory_space<vmem>>, vector<8x384xf32>,
    %29 = vector.extract_strided_slice %1 {offsets = [0, 37], sizes = [8, 347], strides = [1, 1]} : vector<8x384xf32> to vector<8x347xf32>
    %30 = vector.extract_strided_slice %3 {offsets = [0, 0], sizes = [8, 37], strides = [1, 1]} : vector<8x128xf32> to vector<8x37xf32>
    %31 = tpu.concatenate %29, %30 in 1 : vector<8x347xf32>, vector<8x37xf32> -> vector<8x384xf32>
    %c56 = arith.constant 56 : index
    %c0_15 = arith.constant 0 : index
    %32 = vector.load %arg7[%c56, %c0_15] : memref<72x384xf32, #tpu.memory_space<vmem>>, vector<8x384xf32>
    tpu.vector_store %arg7[%c56, %c0_15], %31 {strides = array<i32>} : memref<72x384xf32, #tpu.memory_space<vmem>>, vector<8x384xf32>,
    %33 = vector.extract_strided_slice %1 {offsets = [0, 38], sizes = [8, 346], strides = [1, 1]} : vector<8x384xf32> to vector<8x346xf32>
    %34 = vector.extract_strided_slice %3 {offsets = [0, 0], sizes = [8, 38], strides = [1, 1]} : vector<8x128xf32> to vector<8x38xf32>
    %35 = tpu.concatenate %33, %34 in 1 : vector<8x346xf32>, vector<8x38xf32> -> vector<8x384xf32>
    %c64 = arith.constant 64 : index
    %c0_16 = arith.constant 0 : index
    %36 = vector.load %arg7[%c64, %c0_16] : memref<72x384xf32, #tpu.memory_space<vmem>>, vector<8x384xf32>
    tpu.vector_store %arg7[%c64, %c0_16], %35 {strides = array<i32>} : memref<72x384xf32, #tpu.memory_space<vmem>>, vector<8x384xf32>,
    %c0_17 = arith.constant 0 : index
    %c0_18 = arith.constant 0 : index
    %37 = vector.load %arg2[%c0_17, %c0_18] : memref<8x72xf32, #tpu.memory_space<vmem>>, vector<8x72xf32>
    %c0_19 = arith.constant 0 : index
    %c0_20 = arith.constant 0 : index
    %38 = vector.load %arg7[%c0_19, %c0_20] : memref<72x384xf32, #tpu.memory_space<vmem>>, vector<72x384xf32>
    %cst = arith.constant dense<0.000000e+00> : vector<8x384xf32>
    %39 = tpu.matmul %37, %38, %cst {dimension_numbers = #tpu.dot_dimension_numbers<[1], [0], [0], [1], [0, 0, 1, 1], [], []>, precision = #tpu.contract_precision<fp32>} : vector<8x72xf32>, vector<72x384xf32>, vector<8x384xf32> -> vector<8x384xf32>
    %c0_21 = arith.constant 0 : index
    %c0_22 = arith.constant 0 : index
    %40 = vector.load %arg3[%c0_21, %c0_22] : memref<8x128xf32, #tpu.memory_space<vmem>>, vector<8x1xf32>
    %41 = vector.broadcast %40 : vector<8x1xf32> to vector<8x384xf32>
    %42 = arith.addf %39, %41 : vector<8x384xf32>
    %c0_23 = arith.constant 0 : index
    %c0_24 = arith.constant 0 : index
    %c0_25 = arith.constant 0 : index
    %43 = vector.load %arg6[%c0_23, %c0_24, %c0_25] : memref<1x8x384xf32, #tpu.memory_space<vmem>>, vector<1x8x384xf32>
    %44 = vector.shape_cast %43 : vector<1x8x384xf32> to vector<8x384xf32>
    %45 = vector.shape_cast %42 : vector<8x384xf32> to vector<1x8x384xf32>
    tpu.vector_store %arg6[%c0_23, %c0_24, %c0_25], %45 {strides = array<i32>} : memref<1x8x384xf32, #tpu.memory_space<vmem>>, vector<1x8x384xf32>,
    return
  }
  func.func @transform_0(%arg0: i32, %arg1: i32) -> (i32, i32) {
    %c0_i32 = arith.constant 0 : i32
    %c0_i32_0 = arith.constant 0 : i32
    %c0_i32_1 = arith.constant 0 : i32
    return %c0_i32, %c0_i32_0 : i32, i32
  }
  func.func @transform_1(%arg0: i32, %arg1: i32) -> (i32, i32) {
    %c0_i32 = arith.constant 0 : i32
    %c0_i32_0 = arith.constant 0 : i32
    %c0_i32_1 = arith.constant 0 : i32
    return %c0_i32, %c0_i32_0 : i32, i32
  }
  func.func @transform_2(%arg0: i32, %arg1: i32) -> (i32, i32, i32, i32) {
    %c0_i32 = arith.constant 0 : i32
    %c0_i32_0 = arith.constant 0 : i32
    %c0_i32_1 = arith.constant 0 : i32
    return %arg0, %c0_i32, %c0_i32_0, %arg1 : i32, i32, i32, i32
  }
  func.func @transform_3(%arg0: i32, %arg1: i32) -> (i32, i32, i32, i32) {
    %c1_i32 = arith.constant 1 : i32
    %0 = arith.addi %arg1, %c1_i32 : i32
    %c3_i32 = arith.constant 3 : i32
    %1 = arith.muli %0, %c3_i32 : i32
    %c0_i32 = arith.constant 0 : i32
    %c0_i32_0 = arith.constant 0 : i32
    %c0_i32_1 = arith.constant 0 : i32
    return %arg0, %c0_i32, %c0_i32_0, %1 : i32, i32, i32, i32
  }
  func.func @transform_4(%arg0: i32, %arg1: i32) -> (i32, i32, i32) {
    %c0_i32 = arith.constant 0 : i32
    %c0_i32_0 = arith.constant 0 : i32
    return %arg0, %c0_i32, %arg1 : i32, i32, i32
  }
}

</mosaic_0001>

<llo_original>
// kernel: tpu_custom_call.1
$region0: #{tpu_custom_call.1}
  #allocation0 [shape = 'u32[]', space=smem, size = 0x4, offset = 0x4, fixed_abs, tag = 'smem constant byte address 0x4 - core index']
  #allocation1 [shape = 'u32[72,128]{1,0:T(1,128)}', space=vmem, size = 0x9000, scoped, tag = 'internal scratch']
  #allocation2 [shape = 'f32[72,384]{1,0:T(8,128)}', space=vmem, size = 0x1b000, scoped, tag = 'scratch operand']
  %s0 = inlined_call_operand.hbm [shape: f32[8,72], index: 0, kind: input, shape index: {}]
  %s1 = inlined_call_operand.hbm [shape: f32[8,128], index: 1, kind: input, shape index: {}]
  %s2 = inlined_call_operand.hbm [shape: f32[2,1,8,512], index: 2, kind: input, shape index: {}]
  %s3 = inlined_call_operand.hbm [shape: f32[2,1,8,512], index: 3, kind: input, shape index: {}]
  %s4 = inlined_call_operand.hbm [shape: f32[2,8,384], index: 4, kind: output, shape index: {}]
  %s5 = sld [smem:[#allocation0]]
  $region65: #{tpu_custom_call.1} parent=0
    _
  %s7 = ssub.s32 1, %s5
  %s8 = scalar_select 0, %s7, %s5
  $region1: #{tpu_custom_call.1} parent=0
    #allocation3 [shape = 'u8[4096]{0}', space=vmem, size = 0x1000, scoped, tag = 'input window, operand 0, single buffered']
    #allocation4 [shape = 's32[2]{0}', space=sflag, size = 0x8, scoped, tag = 'scoped memory for tpu_custom_call.1']
    #allocation5 [shape = 's32[2]{0}', space=sflag, size = 0x8, scoped, tag = 'scoped memory for tpu_custom_call.1']
    #allocation6 [shape = 'u8[4096]{0}', space=vmem, size = 0x1000, scoped, tag = 'input window, operand 1, single buffered']
    #allocation7 [shape = 's32[1]{0}', space=sflag, size = 0x4, scoped, tag = 'scoped memory for tpu_custom_call.1']
    #allocation8 [shape = 'u8[24576]{0}', space=vmem, size = 0x6000, scoped, tag = 'input window, operand 2']
    #allocation9 [shape = 'u8[8192]{0}', space=vmem, size = 0x2000, scoped, tag = 'input window, operand 3']
    #allocation10 [shape = 'u8[24576]{0}', space=vmem, size = 0x6000, scoped, tag = 'output window, operand 0']
    %9 = vsyncpa [#allocation4], 0
    %10 = vsyncpa [#allocation7], 0
    %11 = vsyncpa [#allocation5], 0
    %s12 = scalar_lea.sflag [#allocation5], 1
    %13 = vsyncpa %s12, 0
    loop: start=0, step=1, limit=4
    $region2: #{tpu_custom_call.1} parent=1 // loop_pre_header
      _
    $region3: #{tpu_custom_call.1} parent=1 // loop_header
      %s15 = sphi 0, %s19
      %p16 = scmp.ge.s32.totalorder %s15, 4
      %s22 = sphi 0, %s34
      %s23 = sphi 0, %s30
      %s24 = sphi 0, %s22
      %s25 = sphi 0, %s23
      %s26 = sphi 0, %s24
      %s27 = sphi 0, %s25
      %s35 = sphi 0, %s35
      %s37 = sphi 0, %s35
      %s38 = sphi 0, %s37
      %s52 = sphi 0, %s38
      %s56 = sphi 0, %s56
      %s58 = sphi 0, %s56
      %s59 = sphi 0, %s58
      %s73 = sphi 0, %s59
      %s81 = sphi 0, %s83
      %s84 = sphi 0, %s81
      %s85 = sphi 0, %s84
      %s101 = sphi 0, %s85
      %s113 = sphi 0, %s115
      %s116 = sphi 0, %s113
      %s117 = sphi 0, %s116
      %s133 = sphi 0, %s117
      %s141 = sphi 0, %s143
      %s144 = sphi 0, %s141
      %s145 = sphi 0, %s144
      %s161 = sphi 0, %s145
    $region4: #{tpu_custom_call.1} parent=1 // loop_header_branch
      %18 = sbr.rel (%p16) target = $region8
    $region5: #{tpu_custom_call.1} parent=1 // loop_body
      %s20 = ssub.s32 %s15, 1
      %s21 = ssub.s32 %s15, 2
      %s28 = sadd.s32 1, %s23
      %p29 = scmp.ge.s32.totalorder %s28, 1
      %s30 = scalar_select %p29, 0, %s28
      %s31 = sadd.s32 1, %s22
      %s32 = scalar_select %p29, %s31, %s22
      %p33 = scmp.ge.s32.totalorder %s32, 2
      %s34 = scalar_select %p33, 0, %s32
      %s36 = sadd.s32 %s35, 1
      %p39 = scmp.eq.s32.totalorder %s15, 1
      %p40 = scmp.ne.s32.totalorder %s35, %s37
      %p41 = scmp.eq.s32.totalorder %s15, 0
      %p42 = por %p40, %p41
      %p43 = scmp.ne.s32.totalorder %s35, %s37
      %p44 = scmp.eq.s32.totalorder %s20, 1
      %p45 = por %p43, %p44
      %p46 = scmp.ne.s32.totalorder %s37, %s38
      %p47 = scmp.eq.s32.totalorder %s20, 0
      %p48 = por %p46, %p47
      %p49 = scmp.ne.s32.totalorder %s37, %s38
      %p50 = scmp.eq.s32.totalorder %s21, 1
      %p51 = por %p49, %p50
      %p53 = scmp.ne.s32.totalorder %s38, %s52
      %p54 = scmp.eq.s32.totalorder %s21, 0
      %p55 = por %p53, %p54
      %s57 = sadd.s32 %s56, 1
      %p60 = scmp.eq.s32.totalorder %s15, 1
      %p61 = scmp.ne.s32.totalorder %s56, %s58
      %p62 = scmp.eq.s32.totalorder %s15, 0
      %p63 = por %p61, %p62
      %p64 = scmp.ne.s32.totalorder %s56, %s58
      %p65 = scmp.eq.s32.totalorder %s20, 1
      %p66 = por %p64, %p65
      %p67 = scmp.ne.s32.totalorder %s58, %s59
      %p68 = scmp.eq.s32.totalorder %s20, 0
      %p69 = por %p67, %p68
      %p70 = scmp.ne.s32.totalorder %s58, %s59
      %p71 = scmp.eq.s32.totalorder %s21, 1
      %p72 = por %p70, %p71
      %p74 = scmp.ne.s32.totalorder %s59, %s73
      %p75 = scmp.eq.s32.totalorder %s21, 0
      %p76 = por %p74, %p75
      %s77 = ssub.s32 %s22, %s34
      %s78 = ssub.s32 %s23, %s30
      %s79 = sor.u32 %s77, %s78
      %p80 = scmp.eq.s32.totalorder %s79, 0
      %s82 = sadd.s32 %s81, 1
      %s83 = scalar_select %p80, %s81, %s82
      %p86 = pneg %p80
      %p87 = scmp.eq.s32.totalorder %s15, 1
      %p88 = por %p86, %p87
      %p89 = scmp.ne.s32.totalorder %s81, %s84
      %p90 = scmp.eq.s32.totalorder %s15, 0
      %p91 = por %p89, %p90
      %p92 = scmp.ne.s32.totalorder %s81, %s84
      %p93 = scmp.eq.s32.totalorder %s20, 1
      %p94 = por %p92, %p93
      %p95 = scmp.ne.s32.totalorder %s84, %s85
      %p96 = scmp.eq.s32.totalorder %s20, 0
      %p97 = por %p95, %p96
      %p98 = scmp.ne.s32.totalorder %s84, %s85
      %p99 = scmp.eq.s32.totalorder %s21, 1
      %p100 = por %p98, %p99
      %p102 = scmp.ne.s32.totalorder %s85, %s101
      %p103 = scmp.eq.s32.totalorder %s21, 0
      %p104 = por %p102, %p103
      %s105 = sadd.s32 %s23, 1
      %s106 = smul.u32 %s105, 3
      %s107 = sadd.s32 %s30, 1
      %s108 = smul.u32 %s107, 3
      %s109 = ssub.s32 %s22, %s34
      %s110 = ssub.s32 %s106, %s108
      %s111 = sor.u32 %s109, %s110
      %p112 = scmp.eq.s32.totalorder %s111, 0
      %s114 = sadd.s32 %s113, 1
      %s115 = scalar_select %p112, %s113, %s114
      %p118 = pneg %p112
      %p119 = scmp.eq.s32.totalorder %s15, 1
      %p120 = por %p118, %p119
      %p121 = scmp.ne.s32.totalorder %s113, %s116
      %p122 = scmp.eq.s32.totalorder %s15, 0
      %p123 = por %p121, %p122
      %p124 = scmp.ne.s32.totalorder %s113, %s116
      %p125 = scmp.eq.s32.totalorder %s20, 1
      %p126 = por %p124, %p125
      %p127 = scmp.ne.s32.totalorder %s116, %s117
      %p128 = scmp.eq.s32.totalorder %s20, 0
      %p129 = por %p127, %p128
      %p130 = scmp.ne.s32.totalorder %s116, %s117
      %p131 = scmp.eq.s32.totalorder %s21, 1
      %p132 = por %p130, %p131
      %p134 = scmp.ne.s32.totalorder %s117, %s133
      %p135 = scmp.eq.s32.totalorder %s21, 0
      %p136 = por %p134, %p135
      %s137 = ssub.s32 %s22, %s34
      %s138 = ssub.s32 %s23, %s30
      %s139 = sor.u32 %s137, %s138
      %p140 = scmp.eq.s32.totalorder %s139, 0
      %s142 = sadd.s32 %s141, 1
      %s143 = scalar_select %p140, %s141, %s142
      %p146 = pneg %p140
      %p147 = scmp.eq.s32.totalorder %s15, 1
      %p148 = por %p146, %p147
      %p149 = scmp.ne.s32.totalorder %s141, %s144
      %p150 = scmp.eq.s32.totalorder %s15, 0
      %p151 = por %p149, %p150
      %p152 = scmp.ne.s32.totalorder %s141, %s144
      %p153 = scmp.eq.s32.totalorder %s20, 1
      %p154 = por %p152, %p153
      %p155 = scmp.ne.s32.totalorder %s144, %s145
      %p156 = scmp.eq.s32.totalorder %s20, 0
      %p157 = por %p155, %p156
      %p158 = scmp.ne.s32.totalorder %s144, %s145
      %p159 = scmp.eq.s32.totalorder %s21, 1
      %p160 = por %p158, %p159
      %p162 = scmp.ne.s32.totalorder %s145, %s161
      %p163 = scmp.eq.s32.totalorder %s21, 0
      %p164 = por %p162, %p163
      %p165 = scmp.le.s32.totalorder 1, %s15
      %p166 = scmp.lt.s32.totalorder %s15, 3
      %p167 = pnand %p165, %p166
      %p168 = pneg %p167
      // Predicated region
      $region9: #{tpu_custom_call.1} parent=5 // pred_check
        _
      $region10: #{tpu_custom_call.1} parent=5 // pred_check_branch
        %170 = sbr.rel (%p167) target = $region12
      $region11: #{tpu_custom_call.1} parent=5 // pred_region
        %s171 = ssub.s32 %s15, 1
        // Predicated region
        $region13: #{tpu_custom_call.1} parent=11 // pred_check
          %p172 = pneg %p48
        $region14: #{tpu_custom_call.1} parent=11 // pred_check_branch
          %174 = sbr.rel (%p172) target = $region16
        $region15: #{tpu_custom_call.1} parent=11 // pred_region
          %176 = vsyncadd [#allocation4], 0
          %s178 = sshll.u32 %s0, 4
          %s179 = int_to_ptr.hbm [resolvable:$true] %s178
          %s180 = sshll.u32 [#allocation3], 4
          %s181 = int_to_ptr.vmem [resolvable:$true] %s180
          %183 = dma.hbm_to_vmem [thread:$0]  %s179, 128, %s181, [#allocation4]
        $region16: #{tpu_custom_call.1} parent=11 // pred_fallthru
          _
        // Predicated region
        $region17: #{tpu_custom_call.1} parent=11 // pred_check
          %p184 = pneg %p69
        $region18: #{tpu_custom_call.1} parent=11 // pred_check_branch
          %186 = sbr.rel (%p184) target = $region20
        $region19: #{tpu_custom_call.1} parent=11 // pred_region
          %188 = vsyncadd [#allocation7], 0
          %s190 = sshll.u32 %s1, 4
          %s191 = int_to_ptr.hbm [resolvable:$true] %s190
          %s192 = sshll.u32 [#allocation6], 4
          %s193 = int_to_ptr.vmem [resolvable:$true] %s192
          %195 = dma.hbm_to_vmem [thread:$0]  %s191, 128, %s193, [#allocation7]
        $region20: #{tpu_custom_call.1} parent=11 // pred_fallthru
          _
      $region12: #{tpu_custom_call.1} parent=5 // pred_fallthru
        _
      %p196 = scmp.lt.s32.totalorder %s15, 2
      // Predicated region
      $region21: #{tpu_custom_call.1} parent=5 // pred_check
        %p197 = pneg %p196
      $region22: #{tpu_custom_call.1} parent=5 // pred_check_branch
        %199 = sbr.rel (%p197) target = $region24
      $region23: #{tpu_custom_call.1} parent=5 // pred_region
        // Predicated region
        $region25: #{tpu_custom_call.1} parent=23 // pred_check
          %p200 = pneg %p91
        $region26: #{tpu_custom_call.1} parent=23 // pred_check_branch
          %202 = sbr.rel (%p200) target = $region28
        $region27: #{tpu_custom_call.1} parent=23 // pred_region
          %s203 = sand.u32 %s15, 1
          %s204 = scalar_lea.sflag [#allocation4], %s203
          %s205 = sand.u32 %s81, 1
          %s206 = smul.addr %s205, 24
          %s207 = scalar_lea.vmem [#allocation8], %s206
          %s208 = smul.u32 3, %s23
          %s209 = ssub.s32 4, %s208
          %p210 = scmp.lt.s32.totalorder %s209, 3
          %s211 = scalar_select %p210, %s209, 3
          %s212 = smul.u32 8, %s211
          %s213 = ssub.s32 24, %s212
          %s214 = sshll.u32 %s213, 4
          %215 = vsyncadd %s204, %s214
          %p216 = scmp.ne.s32.totalorder 0, %s212
          %s217 = smul.addr %s22, 4
          %s218 = sadd.s32 %s208, %s217
          %s219 = smul.addr %s218, 8
          %s220 = scalar_lea.hbm %s2, %s219
          %s221 = smul.u32 %s211, 8
          %s222 = sshll.u32 %s221, 4
          %s223 = sshll.u32 %s220, 4
          %s224 = int_to_ptr.hbm [resolvable:$true] %s223
          %s225 = sshll.u32 %s207, 4
          %s226 = int_to_ptr.vmem [resolvable:$true] %s225
          %228 = dma.hbm_to_vmem [thread:$0]  (%p216), %s224, %s222, %s226, %s204
        $region28: #{tpu_custom_call.1} parent=23 // pred_fallthru
          _
        // Predicated region
        $region29: #{tpu_custom_call.1} parent=23 // pred_check
          %p229 = pneg %p123
        $region30: #{tpu_custom_call.1} parent=23 // pred_check_branch
          %231 = sbr.rel (%p229) target = $region32
        $region31: #{tpu_custom_call.1} parent=23 // pred_region
          %s232 = sand.u32 %s15, 1
          %s233 = scalar_lea.sflag [#allocation4], %s232
          %s234 = sand.u32 %s113, 1
          %s235 = smul.addr %s234, 8
          %s236 = scalar_lea.vmem [#allocation9], %s235
          %s237 = sadd.s32 %s23, 1
          %s238 = smul.u32 %s237, 3
          %240 = vsyncadd %s233, 0
          %s241 = smul.addr %s22, 4
          %s242 = sadd.s32 %s238, %s241
          %s243 = smul.addr %s242, 8
          %s244 = scalar_lea.hbm %s3, %s243
          %s246 = sshll.u32 %s244, 4
          %s247 = int_to_ptr.hbm [resolvable:$true] %s246
          %s248 = sshll.u32 %s236, 4
          %s249 = int_to_ptr.vmem [resolvable:$true] %s248
          %251 = dma.hbm_to_vmem [thread:$0]  %s247, 128, %s249, %s233
        $region32: #{tpu_custom_call.1} parent=23 // pred_fallthru
          _
      $region24: #{tpu_custom_call.1} parent=5 // pred_fallthru
        _
      %p252 = scmp.le.s32.totalorder 1, %s15
      %p253 = scmp.lt.s32.totalorder %s15, 3
      %p254 = pnand %p252, %p253
      %p255 = pneg %p254
      // Predicated region
      $region33: #{tpu_custom_call.1} parent=5 // pred_check
        _
      $region34: #{tpu_custom_call.1} parent=5 // pred_check_branch
        %257 = sbr.rel (%p254) target = $region36
      $region35: #{tpu_custom_call.1} parent=5 // pred_region
        %s258 = ssub.s32 %s15, 1
        // Predicated region
        $region37: #{tpu_custom_call.1} parent=35 // pred_check
          %p259 = pneg %p48
        $region38: #{tpu_custom_call.1} parent=35 // pred_check_branch
          %261 = sbr.rel (%p259) target = $region40
        $region39: #{tpu_custom_call.1} parent=35 // pred_region
          %263 = dma.done [#allocation4], 128
        $region40: #{tpu_custom_call.1} parent=35 // pred_fallthru
          _
        // Predicated region
        $region41: #{tpu_custom_call.1} parent=35 // pred_check
          %p264 = pneg %p69
        $region42: #{tpu_custom_call.1} parent=35 // pred_check_branch
          %266 = sbr.rel (%p264) target = $region44
        $region43: #{tpu_custom_call.1} parent=35 // pred_region
          %268 = dma.done [#allocation7], 128
        $region44: #{tpu_custom_call.1} parent=35 // pred_fallthru
          _
        %s269 = sand.u32 %s20, 1
        %s270 = scalar_lea.sflag [#allocation4], %s269
        %s271 = sand.u32 %s84, 1
        %s272 = smul.addr %s271, 24
        %s273 = scalar_lea.vmem [#allocation8], %s272
        // Predicated region
        $region45: #{tpu_custom_call.1} parent=35 // pred_check
          %p274 = pneg %p97
        $region46: #{tpu_custom_call.1} parent=35 // pred_check_branch
          %276 = sbr.rel (%p274) target = $region48
        $region47: #{tpu_custom_call.1} parent=35 // pred_region
          %278 = dma.done %s270, 384
        $region48: #{tpu_custom_call.1} parent=35 // pred_fallthru
          _
        %s279 = sand.u32 %s20, 1
        %s280 = scalar_lea.sflag [#allocation4], %s279
        %s281 = sand.u32 %s116, 1
        %s282 = smul.addr %s281, 8
        %s283 = scalar_lea.vmem [#allocation9], %s282
        // Predicated region
        $region49: #{tpu_custom_call.1} parent=35 // pred_check
          %p284 = pneg %p129
        $region50: #{tpu_custom_call.1} parent=35 // pred_check_branch
          %286 = sbr.rel (%p284) target = $region52
        $region51: #{tpu_custom_call.1} parent=35 // pred_region
          %288 = dma.done %s280, 128
        $region52: #{tpu_custom_call.1} parent=35 // pred_fallthru
          _
        %p289 = pneg %p48
        %p290 = pneg %p45
        %p291 = pneg %p69
        %p292 = pneg %p66
        %s293 = sand.u32 %s20, 1
        %s294 = scalar_lea.sflag [#allocation4], %s293
        %s295 = sand.u32 %s84, 1
        %s296 = smul.addr %s295, 24
        %s297 = scalar_lea.vmem [#allocation8], %s296
        %p298 = pneg %p97
        %p299 = pneg %p94
        %s300 = sand.u32 %s20, 1
        %s301 = scalar_lea.sflag [#allocation4], %s300
        %s302 = sand.u32 %s116, 1
        %s303 = smul.addr %s302, 8
        %s304 = scalar_lea.vmem [#allocation9], %s303
        %p305 = pneg %p129
        %p306 = pneg %p126
        %p307 = pneg %p157
        %p308 = pneg %p154
        %s309 = sand.u32 %s144, 1
        %s310 = scalar_lea.sflag [#allocation5], %s309
        %s311 = sand.u32 %s144, 1
        %s312 = smul.addr %s311, 24
        %s313 = scalar_lea.vmem [#allocation10], %s312
        %s314 = smul.u32 3, %s25
        %s315 = ssub.s32 4, %s314
        %p316 = scmp.lt.s32.totalorder %s315, 3
        %s317 = scalar_select %p316, %s315, 3
        %s318 = smul.u32 8, %s317
        %s319 = sadd.s32 %s25, 1
        %s320 = smul.u32 %s319, 3
        %s321 = smul.u32 3, %s25
        %v322 = vld [vmem:[%s273] sm:$0xff]
        %v323 = vld [vmem:[%s273 + $0x8] sm:$0xff]
        %v324 = vld [vmem:[%s273 + $0x10] sm:$0xff]
        %v325 = vld [vmem:[%s283] sm:$0xff]
        %326 = vst [vmem:[#allocation2] sm:$0xff] %v322
        %327 = vst [vmem:[#allocation2 + $0x8] sm:$0xff] %v323
        %328 = vst [vmem:[#allocation2 + $0x10] sm:$0xff] %v324
        %332 = vrot.lane.b32.xlu0 %v322, 127
        %v333 = vpop.permute.xlu0 %332
        %334 = vrot.lane.b32.xlu0 %v323, 127
        %v335 = vpop.permute.xlu0 %334
        %336 = vrot.lane.b32.xlu0 %v324, 127
        %v337 = vpop.permute.xlu0 %336
        %vm338 = vcmask 1039360
        %v339 = vsel %vm338, %v333, %v335
        %v340 = vsel %vm338, %v335, %v337
        %345 = vrot.lane.b32.xlu0 %v325, 127
        %v346 = vpop.permute.xlu0 %345
        %v348 = vsel %vm338, %v337, %v346
        %349 = vst [vmem:[#allocation2 + $0x18] sm:$0xff] %v339
        %350 = vst [vmem:[#allocation2 + $0x20] sm:$0xff] %v340
        %351 = vst [vmem:[#allocation2 + $0x28] sm:$0xff] %v348
        %352 = vrot.lane.b32.xlu0 %v322, 126
        %v353 = vpop.permute.xlu0 %352
        %354 = vrot.lane.b32.xlu0 %v323, 126
        %v355 = vpop.permute.xlu0 %354
        %356 = vrot.lane.b32.xlu0 %v324, 126
        %v357 = vpop.permute.xlu0 %356
        %vm358 = vcmask 1031168
        %v359 = vsel %vm358, %v353, %v355
        %v360 = vsel %vm358, %v355, %v357
        %364 = vrot.lane.b32.xlu0 %v325, 126
        %v365 = vpop.permute.xlu0 %364
        %v367 = vsel %vm358, %v357, %v365
        %368 = vst [vmem:[#allocation2 + $0x30] sm:$0xff] %v359
        %369 = vst [vmem:[#allocation2 + $0x38] sm:$0xff] %v360
        %370 = vst [vmem:[#allocation2 + $0x40] sm:$0xff] %v367
        %371 = vrot.lane.b32.xlu0 %v322, 110
        %v372 = vpop.permute.xlu0 %371
        %373 = vrot.lane.b32.xlu0 %v323, 110
        %v374 = vpop.permute.xlu0 %373
        %375 = vrot.lane.b32.xlu0 %v324, 110
        %v376 = vpop.permute.xlu0 %375
        %vm377 = vcmask 900096
        %v378 = vsel %vm377, %v372, %v374
        %v379 = vsel %vm377, %v374, %v376
        %383 = vrot.lane.b32.xlu0 %v325, 110
        %v384 = vpop.permute.xlu0 %383
        %v386 = vsel %vm377, %v376, %v384
        %387 = vst [vmem:[#allocation2 + $0x48] sm:$0xff] %v378
        %388 = vst [vmem:[#allocation2 + $0x50] sm:$0xff] %v379
        %389 = vst [vmem:[#allocation2 + $0x58] sm:$0xff] %v386
        %390 = vrot.lane.b32.xlu0 %v322, 109
        %v391 = vpop.permute.xlu0 %390
        %392 = vrot.lane.b32.xlu0 %v323, 109
        %v393 = vpop.permute.xlu0 %392
        %394 = vrot.lane.b32.xlu0 %v324, 109
        %v395 = vpop.permute.xlu0 %394
        %vm396 = vcmask 891904
        %v397 = vsel %vm396, %v391, %v393
        %v398 = vsel %vm396, %v393, %v395
        %402 = vrot.lane.b32.xlu0 %v325, 109
        %v403 = vpop.permute.xlu0 %402
        %v405 = vsel %vm396, %v395, %v403
        %406 = vst [vmem:[#allocation2 + $0x60] sm:$0xff] %v397
        %407 = vst [vmem:[#allocation2 + $0x68] sm:$0xff] %v398
        %408 = vst [vmem:[#allocation2 + $0x70] sm:$0xff] %v405
        %409 = vrot.lane.b32.xlu0 %v322, 108
        %v410 = vpop.permute.xlu0 %409
        %411 = vrot.lane.b32.xlu0 %v323, 108
        %v412 = vpop.permute.xlu0 %411
        %413 = vrot.lane.b32.xlu0 %v324, 108
        %v414 = vpop.permute.xlu0 %413
        %vm415 = vcmask 883712
        %v416 = vsel %vm415, %v410, %v412
        %v417 = vsel %vm415, %v412, %v414
        %421 = vrot.lane.b32.xlu0 %v325, 108
        %v422 = vpop.permute.xlu0 %421
        %v424 = vsel %vm415, %v414, %v422
        %425 = vst [vmem:[#allocation2 + $0x78] sm:$0xff] %v416
        %426 = vst [vmem:[#allocation2 + $0x80] sm:$0xff] %v417
        %427 = vst [vmem:[#allocation2 + $0x88] sm:$0xff] %v424
        %428 = vrot.lane.b32.xlu0 %v322, 92
        %v429 = vpop.permute.xlu0 %428
        %430 = vrot.lane.b32.xlu0 %v323, 92
        %v431 = vpop.permute.xlu0 %430
        %432 = vrot.lane.b32.xlu0 %v324, 92
        %v433 = vpop.permute.xlu0 %432
        %vm434 = vcmask 752640
        %v435 = vsel %vm434, %v429, %v431
        %v436 = vsel %vm434, %v431, %v433
        %440 = vrot.lane.b32.xlu0 %v325, 92
        %v441 = vpop.permute.xlu0 %440
        %v443 = vsel %vm434, %v433, %v441
        %444 = vst [vmem:[#allocation2 + $0x90] sm:$0xff] %v435
        %445 = vst [vmem:[#allocation2 + $0x98] sm:$0xff] %v436
        %446 = vst [vmem:[#allocation2 + $0xa0] sm:$0xff] %v443
        %447 = vrot.lane.b32.xlu0 %v322, 91
        %v448 = vpop.permute.xlu0 %447
        %449 = vrot.lane.b32.xlu0 %v323, 91
        %v450 = vpop.permute.xlu0 %449
        %451 = vrot.lane.b32.xlu0 %v324, 91
        %v452 = vpop.permute.xlu0 %451
        %vm453 = vcmask 744448
        %v454 = vsel %vm453, %v448, %v450
        %v455 = vsel %vm453, %v450, %v452
        %459 = vrot.lane.b32.xlu0 %v325, 91
        %v460 = vpop.permute.xlu0 %459
        %v462 = vsel %vm453, %v452, %v460
        %463 = vst [vmem:[#allocation2 + $0xa8] sm:$0xff] %v454
        %464 = vst [vmem:[#allocation2 + $0xb0] sm:$0xff] %v455
        %465 = vst [vmem:[#allocation2 + $0xb8] sm:$0xff] %v462
        %466 = vrot.lane.b32.xlu0 %v322, 90
        %v467 = vpop.permute.xlu0 %466
        %468 = vrot.lane.b32.xlu0 %v323, 90
        %v469 = vpop.permute.xlu0 %468
        %470 = vrot.lane.b32.xlu0 %v324, 90
        %v471 = vpop.permute.xlu0 %470
        %vm472 = vcmask 736256
        %v473 = vsel %vm472, %v467, %v469
        %v474 = vsel %vm472, %v469, %v471
        %478 = vrot.lane.b32.xlu0 %v325, 90
        %v479 = vpop.permute.xlu0 %478
        %v481 = vsel %vm472, %v471, %v479
        %482 = vst [vmem:[#allocation2 + $0xc0] sm:$0xff] %v473
        %483 = vst [vmem:[#allocation2 + $0xc8] sm:$0xff] %v474
        %484 = vst [vmem:[#allocation2 + $0xd0] sm:$0xff] %v481
        %v485 = vld [vmem:[#allocation3] sm:$0xff]
        %v486 = vld [vmem:[#allocation2] sm:$0xff]
        %v487 = vld [vmem:[#allocation2 + $0x8] sm:$0xff]
        %v488 = vld [vmem:[#allocation2 + $0x10] sm:$0xff]
        %v489 = vld [vmem:[#allocation2 + $0x18] sm:$0xff]
        %v490 = vld [vmem:[#allocation2 + $0x20] sm:$0xff]
        %v491 = vld [vmem:[#allocation2 + $0x28] sm:$0xff]
        %v492 = vld [vmem:[#allocation2 + $0x30] sm:$0xff]
        %v493 = vld [vmem:[#allocation2 + $0x38] sm:$0xff]
        %v494 = vld [vmem:[#allocation2 + $0x40] sm:$0xff]
        %v495 = vld [vmem:[#allocation2 + $0x48] sm:$0xff]
        %v496 = vld [vmem:[#allocation2 + $0x50] sm:$0xff]
        %v497 = vld [vmem:[#allocation2 + $0x58] sm:$0xff]
        %v498 = vld [vmem:[#allocation2 + $0x60] sm:$0xff]
        %v499 = vld [vmem:[#allocation2 + $0x68] sm:$0xff]
        %v500 = vld [vmem:[#allocation2 + $0x70] sm:$0xff]
        %v501 = vld [vmem:[#allocation2 + $0x78] sm:$0xff]
        %v502 = vld [vmem:[#allocation2 + $0x80] sm:$0xff]
        %v503 = vld [vmem:[#allocation2 + $0x88] sm:$0xff]
        %v504 = vld [vmem:[#allocation2 + $0x90] sm:$0xff]
        %v505 = vld [vmem:[#allocation2 + $0x98] sm:$0xff]
        %v506 = vld [vmem:[#allocation2 + $0xa0] sm:$0xff]
        %v507 = vld [vmem:[#allocation2 + $0xa8] sm:$0xff]
        %v508 = vld [vmem:[#allocation2 + $0xb0] sm:$0xff]
        %v509 = vld [vmem:[#allocation2 + $0xb8] sm:$0xff]
        %v510 = vld [vmem:[#allocation2 + $0xc0] sm:$0xff]
        %v511 = vld [vmem:[#allocation2 + $0xc8] sm:$0xff]
        %v512 = vld [vmem:[#allocation2 + $0xd0] sm:$0xff]
        %v513 = vld [vmem:[#allocation6] sm:$0xff]
        %515 = vset.pattern.permute.xlu0 0
        %516 = vperm.xlu0 %515, %v513
        %v517 = vpop.permute.xlu0 %516
        %vm519 = vcmask 588800
        %v521 = vsel %vm519, %v485, 0
        %523 = vmatpush.msra.mxu0 0.0
        %524 = vmatpush.msra.mxu0 0.0
        %525 = vmatpush.msra.mxu0 0.0
        %526 = vmatpush.msra.mxu0 0.0
        %527 = vmatpush.msra.mxu0 0.0
        %528 = vmatpush.msra.mxu0 0.0
        %529 = vmatpush.msra.mxu0 0.0
        %v530 = vand.u32 %v510, 4294901760
        %531 = vmatpush.msra.mxu0 %v530
        %v532 = vand.u32 %v507, 4294901760
        %533 = vmatpush.msra.mxu0 %v532
        %v534 = vand.u32 %v504, 4294901760
        %535 = vmatpush.msra.mxu0 %v534
        %v536 = vand.u32 %v501, 4294901760
        %537 = vmatpush.msra.mxu0 %v536
        %v538 = vand.u32 %v498, 4294901760
        %539 = vmatpush.msra.mxu0 %v538
        %v540 = vand.u32 %v495, 4294901760
        %541 = vmatpush.msra.mxu0 %v540
        %v542 = vand.u32 %v492, 4294901760
        %543 = vmatpush.msra.mxu0 %v542
        %v544 = vand.u32 %v489, 4294901760
        %545 = vmatpush.msra.mxu0 %v544
        %v546 = vand.u32 %v486, 4294901760
        %547 = vmatpush.msra.mxu0 %v546
        %v548 = vand.u32 %v521, 4294901760
        %v549 = vsub.f32 %v521, %v548
        %v550 = vand.u32 %v549, 4294901760
        %v551 = vsub.f32 %v549, %v550
        %v552 = vand.u32 %v551, 4294901760
        %553 = vmatmul.f32.gmra.mxu0 %v552
        %v554 = vpop.f32.mrf.mxu0
        %v555 = vadd.f32 %v517, %v554
        %556 = vdwg.mxu0
        %557 = vmatpush.msra.mxu0 0.0
        %558 = vmatpush.msra.mxu0 0.0
        %559 = vmatpush.msra.mxu0 0.0
        %560 = vmatpush.msra.mxu0 0.0
        %561 = vmatpush.msra.mxu0 0.0
        %562 = vmatpush.msra.mxu0 0.0
        %563 = vmatpush.msra.mxu0 0.0
        %v564 = vand.u32 %v510, 4294901760
        %v565 = vsub.f32 %v510, %v564
        %v566 = vand.u32 %v565, 4294901760
        %v567 = vsub.f32 %v565, %v566
        %v568 = vand.u32 %v567, 4294901760
        %569 = vmatpush.msra.mxu0 %v568
        %v570 = vand.u32 %v507, 4294901760
        %v571 = vsub.f32 %v507, %v570
        %v572 = vand.u32 %v571, 4294901760
        %v573 = vsub.f32 %v571, %v572
        %v574 = vand.u32 %v573, 4294901760
        %575 = vmatpush.msra.mxu0 %v574
        %v576 = vand.u32 %v504, 4294901760
        %v577 = vsub.f32 %v504, %v576
        %v578 = vand.u32 %v577, 4294901760
        %v579 = vsub.f32 %v577, %v578
        %v580 = vand.u32 %v579, 4294901760
        %581 = vmatpush.msra.mxu0 %v580
        %v582 = vand.u32 %v501, 4294901760
        %v583 = vsub.f32 %v501, %v582
        %v584 = vand.u32 %v583, 4294901760
        %v585 = vsub.f32 %v583, %v584
        %v586 = vand.u32 %v585, 4294901760
        %587 = vmatpush.msra.mxu0 %v586
        %v588 = vand.u32 %v498, 4294901760
        %v589 = vsub.f32 %v498, %v588
        %v590 = vand.u32 %v589, 4294901760
        %v591 = vsub.f32 %v589, %v590
        %v592 = vand.u32 %v591, 4294901760
        %593 = vmatpush.msra.mxu0 %v592
        %v594 = vand.u32 %v495, 4294901760
        %v595 = vsub.f32 %v495, %v594
        %v596 = vand.u32 %v595, 4294901760
        %v597 = vsub.f32 %v595, %v596
        %v598 = vand.u32 %v597, 4294901760
        %599 = vmatpush.msra.mxu0 %v598
        %v600 = vand.u32 %v492, 4294901760
        %v601 = vsub.f32 %v492, %v600
        %v602 = vand.u32 %v601, 4294901760
        %v603 = vsub.f32 %v601, %v602
        %v604 = vand.u32 %v603, 4294901760
        %605 = vmatpush.msra.mxu0 %v604
        %v606 = vand.u32 %v489, 4294901760
        %v607 = vsub.f32 %v489, %v606
        %v608 = vand.u32 %v607, 4294901760
        %v609 = vsub.f32 %v607, %v608
        %v610 = vand.u32 %v609, 4294901760
        %611 = vmatpush.msra.mxu0 %v610
        %v612 = vand.u32 %v486, 4294901760
        %v613 = vsub.f32 %v486, %v612
        %v614 = vand.u32 %v613, 4294901760
        %v615 = vsub.f32 %v613, %v614
        %v616 = vand.u32 %v615, 4294901760
        %617 = vmatpush.msra.mxu0 %v616
        %v618 = vand.u32 %v521, 4294901760
        %619 = vmatmul.f32.gmra.mxu0 %v618
        %v620 = vpop.f32.mrf.mxu0
        %v621 = vadd.f32 %v555, %v620
        %622 = vdwg.mxu0
        %623 = vmatpush.msra.mxu0 0.0
        %624 = vmatpush.msra.mxu0 0.0
        %625 = vmatpush.msra.mxu0 0.0
        %626 = vmatpush.msra.mxu0 0.0
        %627 = vmatpush.msra.mxu0 0.0
        %628 = vmatpush.msra.mxu0 0.0
        %629 = vmatpush.msra.mxu0 0.0
        %v630 = vand.u32 %v510, 4294901760
        %v631 = vsub.f32 %v510, %v630
        %632 = vmatpush.msra.mxu0 %v631
        %v633 = vand.u32 %v507, 4294901760
        %v634 = vsub.f32 %v507, %v633
        %635 = vmatpush.msra.mxu0 %v634
        %v636 = vand.u32 %v504, 4294901760
        %v637 = vsub.f32 %v504, %v636
        %638 = vmatpush.msra.mxu0 %v637
        %v639 = vand.u32 %v501, 4294901760
        %v640 = vsub.f32 %v501, %v639
        %641 = vmatpush.msra.mxu0 %v640
        %v642 = vand.u32 %v498, 4294901760
        %v643 = vsub.f32 %v498, %v642
        %644 = vmatpush.msra.mxu0 %v643
        %v645 = vand.u32 %v495, 4294901760
        %v646 = vsub.f32 %v495, %v645
        %647 = vmatpush.msra.mxu0 %v646
        %v648 = vand.u32 %v492, 4294901760
        %v649 = vsub.f32 %v492, %v648
        %650 = vmatpush.msra.mxu0 %v649
        %v651 = vand.u32 %v489, 4294901760
        %v652 = vsub.f32 %v489, %v651
        %653 = vmatpush.msra.mxu0 %v652
        %v654 = vand.u32 %v486, 4294901760
        %v655 = vsub.f32 %v486, %v654
        %656 = vmatpush.msra.mxu0 %v655
        %v657 = vand.u32 %v521, 4294901760
        %v658 = vsub.f32 %v521, %v657
        %659 = vmatmul.f32.gmra.mxu0 %v658
        %v660 = vpop.f32.mrf.mxu0
        %v661 = vadd.f32 %v621, %v660
        %662 = vdwg.mxu0
        %663 = vmatpush.msra.mxu0 0.0
        %664 = vmatpush.msra.mxu0 0.0
        %665 = vmatpush.msra.mxu0 0.0
        %666 = vmatpush.msra.mxu0 0.0
        %667 = vmatpush.msra.mxu0 0.0
        %668 = vmatpush.msra.mxu0 0.0
        %669 = vmatpush.msra.mxu0 0.0
        %v670 = vand.u32 %v510, 4294901760
        %671 = vmatpush.msra.mxu0 %v670
        %v672 = vand.u32 %v507, 4294901760
        %673 = vmatpush.msra.mxu0 %v672
        %v674 = vand.u32 %v504, 4294901760
        %675 = vmatpush.msra.mxu0 %v674
        %v676 = vand.u32 %v501, 4294901760
        %677 = vmatpush.msra.mxu0 %v676
        %v678 = vand.u32 %v498, 4294901760
        %679 = vmatpush.msra.mxu0 %v678
        %v680 = vand.u32 %v495, 4294901760
        %681 = vmatpush.msra.mxu0 %v680
        %v682 = vand.u32 %v492, 4294901760
        %683 = vmatpush.msra.mxu0 %v682
        %v684 = vand.u32 %v489, 4294901760
        %685 = vmatpush.msra.mxu0 %v684
        %v686 = vand.u32 %v486, 4294901760
        %687 = vmatpush.msra.mxu0 %v686
        %v688 = vand.u32 %v521, 4294901760
        %v689 = vsub.f32 %v521, %v688
        %v690 = vand.u32 %v689, 4294901760
        %691 = vmatmul.f32.gmra.mxu0 %v690
        %v692 = vpop.f32.mrf.mxu0
        %v693 = vadd.f32 %v661, %v692
        %694 = vdwg.mxu0
        %695 = vmatpush.msra.mxu0 0.0
        %696 = vmatpush.msra.mxu0 0.0
        %697 = vmatpush.msra.mxu0 0.0
        %698 = vmatpush.msra.mxu0 0.0
        %699 = vmatpush.msra.mxu0 0.0
        %700 = vmatpush.msra.mxu0 0.0
        %701 = vmatpush.msra.mxu0 0.0
        %v702 = vand.u32 %v510, 4294901760
        %v703 = vsub.f32 %v510, %v702
        %v704 = vand.u32 %v703, 4294901760
        %705 = vmatpush.msra.mxu0 %v704
        %v706 = vand.u32 %v507, 4294901760
        %v707 = vsub.f32 %v507, %v706
        %v708 = vand.u32 %v707, 4294901760
        %709 = vmatpush.msra.mxu0 %v708
        %v710 = vand.u32 %v504, 4294901760
        %v711 = vsub.f32 %v504, %v710
        %v712 = vand.u32 %v711, 4294901760
        %713 = vmatpush.msra.mxu0 %v712
        %v714 = vand.u32 %v501, 4294901760
        %v715 = vsub.f32 %v501, %v714
        %v716 = vand.u32 %v715, 4294901760
        %717 = vmatpush.msra.mxu0 %v716
        %v718 = vand.u32 %v498, 4294901760
        %v719 = vsub.f32 %v498, %v718
        %v720 = vand.u32 %v719, 4294901760
        %721 = vmatpush.msra.mxu0 %v720
        %v722 = vand.u32 %v495, 4294901760
        %v723 = vsub.f32 %v495, %v722
        %v724 = vand.u32 %v723, 4294901760
        %725 = vmatpush.msra.mxu0 %v724
        %v726 = vand.u32 %v492, 4294901760
        %v727 = vsub.f32 %v492, %v726
        %v728 = vand.u32 %v727, 4294901760
        %729 = vmatpush.msra.mxu0 %v728
        %v730 = vand.u32 %v489, 4294901760
        %v731 = vsub.f32 %v489, %v730
        %v732 = vand.u32 %v731, 4294901760
        %733 = vmatpush.msra.mxu0 %v732
        %v734 = vand.u32 %v486, 4294901760
        %v735 = vsub.f32 %v486, %v734
        %v736 = vand.u32 %v735, 4294901760
        %737 = vmatpush.msra.mxu0 %v736
        %v738 = vand.u32 %v521, 4294901760
        %739 = vmatmul.f32.gmra.mxu0 %v738
        %v740 = vpop.f32.mrf.mxu0
        %v741 = vadd.f32 %v693, %v740
        %742 = vdwg.mxu0
        %743 = vmatpush.msra.mxu0 0.0
        %744 = vmatpush.msra.mxu0 0.0
        %745 = vmatpush.msra.mxu0 0.0
        %746 = vmatpush.msra.mxu0 0.0
        %747 = vmatpush.msra.mxu0 0.0
        %748 = vmatpush.msra.mxu0 0.0
        %749 = vmatpush.msra.mxu0 0.0
        %v750 = vand.u32 %v510, 4294901760
        %751 = vmatpush.msra.mxu0 %v750
        %v752 = vand.u32 %v507, 4294901760
        %753 = vmatpush.msra.mxu0 %v752
        %v754 = vand.u32 %v504, 4294901760
        %755 = vmatpush.msra.mxu0 %v754
        %v756 = vand.u32 %v501, 4294901760
        %757 = vmatpush.msra.mxu0 %v756
        %v758 = vand.u32 %v498, 4294901760
        %759 = vmatpush.msra.mxu0 %v758
        %v760 = vand.u32 %v495, 4294901760
        %761 = vmatpush.msra.mxu0 %v760
        %v762 = vand.u32 %v492, 4294901760
        %763 = vmatpush.msra.mxu0 %v762
        %v764 = vand.u32 %v489, 4294901760
        %765 = vmatpush.msra.mxu0 %v764
        %v766 = vand.u32 %v486, 4294901760
        %767 = vmatpush.msra.mxu0 %v766
        %v768 = vand.u32 %v521, 4294901760
        %769 = vmatmul.f32.gmra.mxu0 %v768
        %v770 = vpop.f32.mrf.mxu0
        %v771 = vadd.f32 %v741, %v770
        %772 = vdwg.mxu0
        %773 = vmatpush.msra.mxu0 0.0
        %774 = vmatpush.msra.mxu0 0.0
        %775 = vmatpush.msra.mxu0 0.0
        %776 = vmatpush.msra.mxu0 0.0
        %777 = vmatpush.msra.mxu0 0.0
        %778 = vmatpush.msra.mxu0 0.0
        %779 = vmatpush.msra.mxu0 0.0
        %v780 = vand.u32 %v511, 4294901760
        %781 = vmatpush.msra.mxu0 %v780
        %v782 = vand.u32 %v508, 4294901760
        %783 = vmatpush.msra.mxu0 %v782
        %v784 = vand.u32 %v505, 4294901760
        %785 = vmatpush.msra.mxu0 %v784
        %v786 = vand.u32 %v502, 4294901760
        %787 = vmatpush.msra.mxu0 %v786
        %v788 = vand.u32 %v499, 4294901760
        %789 = vmatpush.msra.mxu0 %v788
        %v790 = vand.u32 %v496, 4294901760
        %791 = vmatpush.msra.mxu0 %v790
        %v792 = vand.u32 %v493, 4294901760
        %793 = vmatpush.msra.mxu0 %v792
        %v794 = vand.u32 %v490, 4294901760
        %795 = vmatpush.msra.mxu0 %v794
        %v796 = vand.u32 %v487, 4294901760
        %797 = vmatpush.msra.mxu0 %v796
        %v798 = vand.u32 %v521, 4294901760
        %v799 = vsub.f32 %v521, %v798
        %v800 = vand.u32 %v799, 4294901760
        %v801 = vsub.f32 %v799, %v800
        %v802 = vand.u32 %v801, 4294901760
        %803 = vmatmul.f32.gmra.mxu0 %v802
        %v804 = vpop.f32.mrf.mxu0
        %v805 = vadd.f32 %v517, %v804
        %806 = vdwg.mxu0
        %807 = vmatpush.msra.mxu0 0.0
        %808 = vmatpush.msra.mxu0 0.0
        %809 = vmatpush.msra.mxu0 0.0
        %810 = vmatpush.msra.mxu0 0.0
        %811 = vmatpush.msra.mxu0 0.0
        %812 = vmatpush.msra.mxu0 0.0
        %813 = vmatpush.msra.mxu0 0.0
        %v814 = vand.u32 %v511, 4294901760
        %v815 = vsub.f32 %v511, %v814
        %v816 = vand.u32 %v815, 4294901760
        %v817 = vsub.f32 %v815, %v816
        %v818 = vand.u32 %v817, 4294901760
        %819 = vmatpush.msra.mxu0 %v818
        %v820 = vand.u32 %v508, 4294901760
        %v821 = vsub.f32 %v508, %v820
        %v822 = vand.u32 %v821, 4294901760
        %v823 = vsub.f32 %v821, %v822
        %v824 = vand.u32 %v823, 4294901760
        %825 = vmatpush.msra.mxu0 %v824
        %v826 = vand.u32 %v505, 4294901760
        %v827 = vsub.f32 %v505, %v826
        %v828 = vand.u32 %v827, 4294901760
        %v829 = vsub.f32 %v827, %v828
        %v830 = vand.u32 %v829, 4294901760
        %831 = vmatpush.msra.mxu0 %v830
        %v832 = vand.u32 %v502, 4294901760
        %v833 = vsub.f32 %v502, %v832
        %v834 = vand.u32 %v833, 4294901760
        %v835 = vsub.f32 %v833, %v834
        %v836 = vand.u32 %v835, 4294901760
        %837 = vmatpush.msra.mxu0 %v836
        %v838 = vand.u32 %v499, 4294901760
        %v839 = vsub.f32 %v499, %v838
        %v840 = vand.u32 %v839, 4294901760
        %v841 = vsub.f32 %v839, %v840
        %v842 = vand.u32 %v841, 4294901760
        %843 = vmatpush.msra.mxu0 %v842
        %v844 = vand.u32 %v496, 4294901760
        %v845 = vsub.f32 %v496, %v844
        %v846 = vand.u32 %v845, 4294901760
        %v847 = vsub.f32 %v845, %v846
        %v848 = vand.u32 %v847, 4294901760
        %849 = vmatpush.msra.mxu0 %v848
        %v850 = vand.u32 %v493, 4294901760
        %v851 = vsub.f32 %v493, %v850
        %v852 = vand.u32 %v851, 4294901760
        %v853 = vsub.f32 %v851, %v852
        %v854 = vand.u32 %v853, 4294901760
        %855 = vmatpush.msra.mxu0 %v854
        %v856 = vand.u32 %v490, 4294901760
        %v857 = vsub.f32 %v490, %v856
        %v858 = vand.u32 %v857, 4294901760
        %v859 = vsub.f32 %v857, %v858
        %v860 = vand.u32 %v859, 4294901760
        %861 = vmatpush.msra.mxu0 %v860
        %v862 = vand.u32 %v487, 4294901760
        %v863 = vsub.f32 %v487, %v862
        %v864 = vand.u32 %v863, 4294901760
        %v865 = vsub.f32 %v863, %v864
        %v866 = vand.u32 %v865, 4294901760
        %867 = vmatpush.msra.mxu0 %v866
        %v868 = vand.u32 %v521, 4294901760
        %869 = vmatmul.f32.gmra.mxu0 %v868
        %v870 = vpop.f32.mrf.mxu0
        %v871 = vadd.f32 %v805, %v870
        %872 = vdwg.mxu0
        %873 = vmatpush.msra.mxu0 0.0
        %874 = vmatpush.msra.mxu0 0.0
        %875 = vmatpush.msra.mxu0 0.0
        %876 = vmatpush.msra.mxu0 0.0
        %877 = vmatpush.msra.mxu0 0.0
        %878 = vmatpush.msra.mxu0 0.0
        %879 = vmatpush.msra.mxu0 0.0
        %v880 = vand.u32 %v511, 4294901760
        %v881 = vsub.f32 %v511, %v880
        %882 = vmatpush.msra.mxu0 %v881
        %v883 = vand.u32 %v508, 4294901760
        %v884 = vsub.f32 %v508, %v883
        %885 = vmatpush.msra.mxu0 %v884
        %v886 = vand.u32 %v505, 4294901760
        %v887 = vsub.f32 %v505, %v886
        %888 = vmatpush.msra.mxu0 %v887
        %v889 = vand.u32 %v502, 4294901760
        %v890 = vsub.f32 %v502, %v889
        %891 = vmatpush.msra.mxu0 %v890
        %v892 = vand.u32 %v499, 4294901760
        %v893 = vsub.f32 %v499, %v892
        %894 = vmatpush.msra.mxu0 %v893
        %v895 = vand.u32 %v496, 4294901760
        %v896 = vsub.f32 %v496, %v895
        %897 = vmatpush.msra.mxu0 %v896
        %v898 = vand.u32 %v493, 4294901760
        %v899 = vsub.f32 %v493, %v898
        %900 = vmatpush.msra.mxu0 %v899
        %v901 = vand.u32 %v490, 4294901760
        %v902 = vsub.f32 %v490, %v901
        %903 = vmatpush.msra.mxu0 %v902
        %v904 = vand.u32 %v487, 4294901760
        %v905 = vsub.f32 %v487, %v904
        %906 = vmatpush.msra.mxu0 %v905
        %v907 = vand.u32 %v521, 4294901760
        %v908 = vsub.f32 %v521, %v907
        %909 = vmatmul.f32.gmra.mxu0 %v908
        %v910 = vpop.f32.mrf.mxu0
        %v911 = vadd.f32 %v871, %v910
        %912 = vdwg.mxu0
        %913 = vmatpush.msra.mxu0 0.0
        %914 = vmatpush.msra.mxu0 0.0
        %915 = vmatpush.msra.mxu0 0.0
        %916 = vmatpush.msra.mxu0 0.0
        %917 = vmatpush.msra.mxu0 0.0
        %918 = vmatpush.msra.mxu0 0.0
        %919 = vmatpush.msra.mxu0 0.0
        %v920 = vand.u32 %v511, 4294901760
        %921 = vmatpush.msra.mxu0 %v920
        %v922 = vand.u32 %v508, 4294901760
        %923 = vmatpush.msra.mxu0 %v922
        %v924 = vand.u32 %v505, 4294901760
        %925 = vmatpush.msra.mxu0 %v924
        %v926 = vand.u32 %v502, 4294901760
        %927 = vmatpush.msra.mxu0 %v926
        %v928 = vand.u32 %v499, 4294901760
        %929 = vmatpush.msra.mxu0 %v928
        %v930 = vand.u32 %v496, 4294901760
        %931 = vmatpush.msra.mxu0 %v930
        %v932 = vand.u32 %v493, 4294901760
        %933 = vmatpush.msra.mxu0 %v932
        %v934 = vand.u32 %v490, 4294901760
        %935 = vmatpush.msra.mxu0 %v934
        %v936 = vand.u32 %v487, 4294901760
        %937 = vmatpush.msra.mxu0 %v936
        %v938 = vand.u32 %v521, 4294901760
        %v939 = vsub.f32 %v521, %v938
        %v940 = vand.u32 %v939, 4294901760
        %941 = vmatmul.f32.gmra.mxu0 %v940
        %v942 = vpop.f32.mrf.mxu0
        %v943 = vadd.f32 %v911, %v942
        %944 = vdwg.mxu0
        %945 = vmatpush.msra.mxu0 0.0
        %946 = vmatpush.msra.mxu0 0.0
        %947 = vmatpush.msra.mxu0 0.0
        %948 = vmatpush.msra.mxu0 0.0
        %949 = vmatpush.msra.mxu0 0.0
        %950 = vmatpush.msra.mxu0 0.0
        %951 = vmatpush.msra.mxu0 0.0
        %v952 = vand.u32 %v511, 4294901760
        %v953 = vsub.f32 %v511, %v952
        %v954 = vand.u32 %v953, 4294901760
        %955 = vmatpush.msra.mxu0 %v954
        %v956 = vand.u32 %v508, 4294901760
        %v957 = vsub.f32 %v508, %v956
        %v958 = vand.u32 %v957, 4294901760
        %959 = vmatpush.msra.mxu0 %v958
        %v960 = vand.u32 %v505, 4294901760
        %v961 = vsub.f32 %v505, %v960
        %v962 = vand.u32 %v961, 4294901760
        %963 = vmatpush.msra.mxu0 %v962
        %v964 = vand.u32 %v502, 4294901760
        %v965 = vsub.f32 %v502, %v964
        %v966 = vand.u32 %v965, 4294901760
        %967 = vmatpush.msra.mxu0 %v966
        %v968 = vand.u32 %v499, 4294901760
        %v969 = vsub.f32 %v499, %v968
        %v970 = vand.u32 %v969, 4294901760
        %971 = vmatpush.msra.mxu0 %v970
        %v972 = vand.u32 %v496, 4294901760
        %v973 = vsub.f32 %v496, %v972
        %v974 = vand.u32 %v973, 4294901760
        %975 = vmatpush.msra.mxu0 %v974
        %v976 = vand.u32 %v493, 4294901760
        %v977 = vsub.f32 %v493, %v976
        %v978 = vand.u32 %v977, 4294901760
        %979 = vmatpush.msra.mxu0 %v978
        %v980 = vand.u32 %v490, 4294901760
        %v981 = vsub.f32 %v490, %v980
        %v982 = vand.u32 %v981, 4294901760
        %983 = vmatpush.msra.mxu0 %v982
        %v984 = vand.u32 %v487, 4294901760
        %v985 = vsub.f32 %v487, %v984
        %v986 = vand.u32 %v985, 4294901760
        %987 = vmatpush.msra.mxu0 %v986
        %v988 = vand.u32 %v521, 4294901760
        %989 = vmatmul.f32.gmra.mxu0 %v988
        %v990 = vpop.f32.mrf.mxu0
        %v991 = vadd.f32 %v943, %v990
        %992 = vdwg.mxu0
        %993 = vmatpush.msra.mxu0 0.0
        %994 = vmatpush.msra.mxu0 0.0
        %995 = vmatpush.msra.mxu0 0.0
        %996 = vmatpush.msra.mxu0 0.0
        %997 = vmatpush.msra.mxu0 0.0
        %998 = vmatpush.msra.mxu0 0.0
        %999 = vmatpush.msra.mxu0 0.0
        %v1000 = vand.u32 %v511, 4294901760
        %1001 = vmatpush.msra.mxu0 %v1000
        %v1002 = vand.u32 %v508, 4294901760
        %1003 = vmatpush.msra.mxu0 %v1002
        %v1004 = vand.u32 %v505, 4294901760
        %1005 = vmatpush.msra.mxu0 %v1004
        %v1006 = vand.u32 %v502, 4294901760
        %1007 = vmatpush.msra.mxu0 %v1006
        %v1008 = vand.u32 %v499, 4294901760
        %1009 = vmatpush.msra.mxu0 %v1008
        %v1010 = vand.u32 %v496, 4294901760
        %1011 = vmatpush.msra.mxu0 %v1010
        %v1012 = vand.u32 %v493, 4294901760
        %1013 = vmatpush.msra.mxu0 %v1012
        %v1014 = vand.u32 %v490, 4294901760
        %1015 = vmatpush.msra.mxu0 %v1014
        %v1016 = vand.u32 %v487, 4294901760
        %1017 = vmatpush.msra.mxu0 %v1016
        %v1018 = vand.u32 %v521, 4294901760
        %1019 = vmatmul.f32.gmra.mxu0 %v1018
        %v1020 = vpop.f32.mrf.mxu0
        %v1021 = vadd.f32 %v991, %v1020
        %1022 = vdwg.mxu0
        %1023 = vmatpush.msra.mxu0 0.0
        %1024 = vmatpush.msra.mxu0 0.0
        %1025 = vmatpush.msra.mxu0 0.0
        %1026 = vmatpush.msra.mxu0 0.0
        %1027 = vmatpush.msra.mxu0 0.0
        %1028 = vmatpush.msra.mxu0 0.0
        %1029 = vmatpush.msra.mxu0 0.0
        %v1030 = vand.u32 %v512, 4294901760
        %1031 = vmatpush.msra.mxu0 %v1030
        %v1032 = vand.u32 %v509, 4294901760
        %1033 = vmatpush.msra.mxu0 %v1032
        %v1034 = vand.u32 %v506, 4294901760
        %1035 = vmatpush.msra.mxu0 %v1034
        %v1036 = vand.u32 %v503, 4294901760
        %1037 = vmatpush.msra.mxu0 %v1036
        %v1038 = vand.u32 %v500, 4294901760
        %1039 = vmatpush.msra.mxu0 %v1038
        %v1040 = vand.u32 %v497, 4294901760
        %1041 = vmatpush.msra.mxu0 %v1040
        %v1042 = vand.u32 %v494, 4294901760
        %1043 = vmatpush.msra.mxu0 %v1042
        %v1044 = vand.u32 %v491, 4294901760
        %1045 = vmatpush.msra.mxu0 %v1044
        %v1046 = vand.u32 %v488, 4294901760
        %1047 = vmatpush.msra.mxu0 %v1046
        %v1048 = vand.u32 %v521, 4294901760
        %v1049 = vsub.f32 %v521, %v1048
        %v1050 = vand.u32 %v1049, 4294901760
        %v1051 = vsub.f32 %v1049, %v1050
        %v1052 = vand.u32 %v1051, 4294901760
        %1053 = vmatmul.f32.gmra.mxu0 %v1052
        %v1054 = vpop.f32.mrf.mxu0
        %v1055 = vadd.f32 %v517, %v1054
        %1056 = vdwg.mxu0
        %1057 = vmatpush.msra.mxu0 0.0
        %1058 = vmatpush.msra.mxu0 0.0
        %1059 = vmatpush.msra.mxu0 0.0
        %1060 = vmatpush.msra.mxu0 0.0
        %1061 = vmatpush.msra.mxu0 0.0
        %1062 = vmatpush.msra.mxu0 0.0
        %1063 = vmatpush.msra.mxu0 0.0
        %v1064 = vand.u32 %v512, 4294901760
        %v1065 = vsub.f32 %v512, %v1064
        %v1066 = vand.u32 %v1065, 4294901760
        %v1067 = vsub.f32 %v1065, %v1066
        %v1068 = vand.u32 %v1067, 4294901760
        %1069 = vmatpush.msra.mxu0 %v1068
        %v1070 = vand.u32 %v509, 4294901760
        %v1071 = vsub.f32 %v509, %v1070
        %v1072 = vand.u32 %v1071, 4294901760
        %v1073 = vsub.f32 %v1071, %v1072
        %v1074 = vand.u32 %v1073, 4294901760
        %1075 = vmatpush.msra.mxu0 %v1074
        %v1076 = vand.u32 %v506, 4294901760
        %v1077 = vsub.f32 %v506, %v1076
        %v1078 = vand.u32 %v1077, 4294901760
        %v1079 = vsub.f32 %v1077, %v1078
        %v1080 = vand.u32 %v1079, 4294901760
        %1081 = vmatpush.msra.mxu0 %v1080
        %v1082 = vand.u32 %v503, 4294901760
        %v1083 = vsub.f32 %v503, %v1082
        %v1084 = vand.u32 %v1083, 4294901760
        %v1085 = vsub.f32 %v1083, %v1084
        %v1086 = vand.u32 %v1085, 4294901760
        %1087 = vmatpush.msra.mxu0 %v1086
        %v1088 = vand.u32 %v500, 4294901760
        %v1089 = vsub.f32 %v500, %v1088
        %v1090 = vand.u32 %v1089, 4294901760
        %v1091 = vsub.f32 %v1089, %v1090
        %v1092 = vand.u32 %v1091, 4294901760
        %1093 = vmatpush.msra.mxu0 %v1092
        %v1094 = vand.u32 %v497, 4294901760
        %v1095 = vsub.f32 %v497, %v1094
        %v1096 = vand.u32 %v1095, 4294901760
        %v1097 = vsub.f32 %v1095, %v1096
        %v1098 = vand.u32 %v1097, 4294901760
        %1099 = vmatpush.msra.mxu0 %v1098
        %v1100 = vand.u32 %v494, 4294901760
        %v1101 = vsub.f32 %v494, %v1100
        %v1102 = vand.u32 %v1101, 4294901760
        %v1103 = vsub.f32 %v1101, %v1102
        %v1104 = vand.u32 %v1103, 4294901760
        %1105 = vmatpush.msra.mxu0 %v1104
        %v1106 = vand.u32 %v491, 4294901760
        %v1107 = vsub.f32 %v491, %v1106
        %v1108 = vand.u32 %v1107, 4294901760
        %v1109 = vsub.f32 %v1107, %v1108
        %v1110 = vand.u32 %v1109, 4294901760
        %1111 = vmatpush.msra.mxu0 %v1110
        %v1112 = vand.u32 %v488, 4294901760
        %v1113 = vsub.f32 %v488, %v1112
        %v1114 = vand.u32 %v1113, 4294901760
        %v1115 = vsub.f32 %v1113, %v1114
        %v1116 = vand.u32 %v1115, 4294901760
        %1117 = vmatpush.msra.mxu0 %v1116
        %v1118 = vand.u32 %v521, 4294901760
        %1119 = vmatmul.f32.gmra.mxu0 %v1118
        %v1120 = vpop.f32.mrf.mxu0
        %v1121 = vadd.f32 %v1055, %v1120
        %1122 = vdwg.mxu0
        %1123 = vmatpush.msra.mxu0 0.0
        %1124 = vmatpush.msra.mxu0 0.0
        %1125 = vmatpush.msra.mxu0 0.0
        %1126 = vmatpush.msra.mxu0 0.0
        %1127 = vmatpush.msra.mxu0 0.0
        %1128 = vmatpush.msra.mxu0 0.0
        %1129 = vmatpush.msra.mxu0 0.0
        %v1130 = vand.u32 %v512, 4294901760
        %v1131 = vsub.f32 %v512, %v1130
        %1132 = vmatpush.msra.mxu0 %v1131
        %v1133 = vand.u32 %v509, 4294901760
        %v1134 = vsub.f32 %v509, %v1133
        %1135 = vmatpush.msra.mxu0 %v1134
        %v1136 = vand.u32 %v506, 4294901760
        %v1137 = vsub.f32 %v506, %v1136
        %1138 = vmatpush.msra.mxu0 %v1137
        %v1139 = vand.u32 %v503, 4294901760
        %v1140 = vsub.f32 %v503, %v1139
        %1141 = vmatpush.msra.mxu0 %v1140
        %v1142 = vand.u32 %v500, 4294901760
        %v1143 = vsub.f32 %v500, %v1142
        %1144 = vmatpush.msra.mxu0 %v1143
        %v1145 = vand.u32 %v497, 4294901760
        %v1146 = vsub.f32 %v497, %v1145
        %1147 = vmatpush.msra.mxu0 %v1146
        %v1148 = vand.u32 %v494, 4294901760
        %v1149 = vsub.f32 %v494, %v1148
        %1150 = vmatpush.msra.mxu0 %v1149
        %v1151 = vand.u32 %v491, 4294901760
        %v1152 = vsub.f32 %v491, %v1151
        %1153 = vmatpush.msra.mxu0 %v1152
        %v1154 = vand.u32 %v488, 4294901760
        %v1155 = vsub.f32 %v488, %v1154
        %1156 = vmatpush.msra.mxu0 %v1155
        %v1157 = vand.u32 %v521, 4294901760
        %v1158 = vsub.f32 %v521, %v1157
        %1159 = vmatmul.f32.gmra.mxu0 %v1158
        %v1160 = vpop.f32.mrf.mxu0
        %v1161 = vadd.f32 %v1121, %v1160
        %1162 = vdwg.mxu0
        %1163 = vmatpush.msra.mxu0 0.0
        %1164 = vmatpush.msra.mxu0 0.0
        %1165 = vmatpush.msra.mxu0 0.0
        %1166 = vmatpush.msra.mxu0 0.0
        %1167 = vmatpush.msra.mxu0 0.0
        %1168 = vmatpush.msra.mxu0 0.0
        %1169 = vmatpush.msra.mxu0 0.0
        %v1170 = vand.u32 %v512, 4294901760
        %1171 = vmatpush.msra.mxu0 %v1170
        %v1172 = vand.u32 %v509, 4294901760
        %1173 = vmatpush.msra.mxu0 %v1172
        %v1174 = vand.u32 %v506, 4294901760
        %1175 = vmatpush.msra.mxu0 %v1174
        %v1176 = vand.u32 %v503, 4294901760
        %1177 = vmatpush.msra.mxu0 %v1176
        %v1178 = vand.u32 %v500, 4294901760
        %1179 = vmatpush.msra.mxu0 %v1178
        %v1180 = vand.u32 %v497, 4294901760
        %1181 = vmatpush.msra.mxu0 %v1180
        %v1182 = vand.u32 %v494, 4294901760
        %1183 = vmatpush.msra.mxu0 %v1182
        %v1184 = vand.u32 %v491, 4294901760
        %1185 = vmatpush.msra.mxu0 %v1184
        %v1186 = vand.u32 %v488, 4294901760
        %1187 = vmatpush.msra.mxu0 %v1186
        %v1188 = vand.u32 %v521, 4294901760
        %v1189 = vsub.f32 %v521, %v1188
        %v1190 = vand.u32 %v1189, 4294901760
        %1191 = vmatmul.f32.gmra.mxu0 %v1190
        %v1192 = vpop.f32.mrf.mxu0
        %v1193 = vadd.f32 %v1161, %v1192
        %1194 = vdwg.mxu0
        %1195 = vmatpush.msra.mxu0 0.0
        %1196 = vmatpush.msra.mxu0 0.0
        %1197 = vmatpush.msra.mxu0 0.0
        %1198 = vmatpush.msra.mxu0 0.0
        %1199 = vmatpush.msra.mxu0 0.0
        %1200 = vmatpush.msra.mxu0 0.0
        %1201 = vmatpush.msra.mxu0 0.0
        %v1202 = vand.u32 %v512, 4294901760
        %v1203 = vsub.f32 %v512, %v1202
        %v1204 = vand.u32 %v1203, 4294901760
        %1205 = vmatpush.msra.mxu0 %v1204
        %v1206 = vand.u32 %v509, 4294901760
        %v1207 = vsub.f32 %v509, %v1206
        %v1208 = vand.u32 %v1207, 4294901760
        %1209 = vmatpush.msra.mxu0 %v1208
        %v1210 = vand.u32 %v506, 4294901760
        %v1211 = vsub.f32 %v506, %v1210
        %v1212 = vand.u32 %v1211, 4294901760
        %1213 = vmatpush.msra.mxu0 %v1212
        %v1214 = vand.u32 %v503, 4294901760
        %v1215 = vsub.f32 %v503, %v1214
        %v1216 = vand.u32 %v1215, 4294901760
        %1217 = vmatpush.msra.mxu0 %v1216
        %v1218 = vand.u32 %v500, 4294901760
        %v1219 = vsub.f32 %v500, %v1218
        %v1220 = vand.u32 %v1219, 4294901760
        %1221 = vmatpush.msra.mxu0 %v1220
        %v1222 = vand.u32 %v497, 4294901760
        %v1223 = vsub.f32 %v497, %v1222
        %v1224 = vand.u32 %v1223, 4294901760
        %1225 = vmatpush.msra.mxu0 %v1224
        %v1226 = vand.u32 %v494, 4294901760
        %v1227 = vsub.f32 %v494, %v1226
        %v1228 = vand.u32 %v1227, 4294901760
        %1229 = vmatpush.msra.mxu0 %v1228
        %v1230 = vand.u32 %v491, 4294901760
        %v1231 = vsub.f32 %v491, %v1230
        %v1232 = vand.u32 %v1231, 4294901760
        %1233 = vmatpush.msra.mxu0 %v1232
        %v1234 = vand.u32 %v488, 4294901760
        %v1235 = vsub.f32 %v488, %v1234
        %v1236 = vand.u32 %v1235, 4294901760
        %1237 = vmatpush.msra.mxu0 %v1236
        %v1238 = vand.u32 %v521, 4294901760
        %1239 = vmatmul.f32.gmra.mxu0 %v1238
        %v1240 = vpop.f32.mrf.mxu0
        %v1241 = vadd.f32 %v1193, %v1240
        %1242 = vdwg.mxu0
        %1243 = vmatpush.msra.mxu0 0.0
        %1244 = vmatpush.msra.mxu0 0.0
        %1245 = vmatpush.msra.mxu0 0.0
        %1246 = vmatpush.msra.mxu0 0.0
        %1247 = vmatpush.msra.mxu0 0.0
        %1248 = vmatpush.msra.mxu0 0.0
        %1249 = vmatpush.msra.mxu0 0.0
        %v1250 = vand.u32 %v512, 4294901760
        %1251 = vmatpush.msra.mxu0 %v1250
        %v1252 = vand.u32 %v509, 4294901760
        %1253 = vmatpush.msra.mxu0 %v1252
        %v1254 = vand.u32 %v506, 4294901760
        %1255 = vmatpush.msra.mxu0 %v1254
        %v1256 = vand.u32 %v503, 4294901760
        %1257 = vmatpush.msra.mxu0 %v1256
        %v1258 = vand.u32 %v500, 4294901760
        %1259 = vmatpush.msra.mxu0 %v1258
        %v1260 = vand.u32 %v497, 4294901760
        %1261 = vmatpush.msra.mxu0 %v1260
        %v1262 = vand.u32 %v494, 4294901760
        %1263 = vmatpush.msra.mxu0 %v1262
        %v1264 = vand.u32 %v491, 4294901760
        %1265 = vmatpush.msra.mxu0 %v1264
        %v1266 = vand.u32 %v488, 4294901760
        %1267 = vmatpush.msra.mxu0 %v1266
        %v1268 = vand.u32 %v521, 4294901760
        %1269 = vmatmul.f32.gmra.mxu0 %v1268
        %v1270 = vpop.f32.mrf.mxu0
        %v1271 = vadd.f32 %v1241, %v1270
        %1272 = vdwg.mxu0
        %1273 = vst [vmem:[%s313] sm:$0xff] %v771
        %1274 = vst [vmem:[%s313 + $0x8] sm:$0xff] %v1021
        %1275 = vst [vmem:[%s313 + $0x10] sm:$0xff] %v1271
        %s1276 = sand.u32 %s144, 1
        %s1277 = scalar_lea.sflag [#allocation5], %s1276
        %s1278 = sand.u32 %s144, 1
        %s1279 = smul.addr %s1278, 24
        %s1280 = scalar_lea.vmem [#allocation10], %s1279
        // Predicated region
        $region53: #{tpu_custom_call.1} parent=35 // pred_check
          %p1281 = pneg %p154
        $region54: #{tpu_custom_call.1} parent=35 // pred_check_branch
          %1283 = sbr.rel (%p1281) target = $region56
        $region55: #{tpu_custom_call.1} parent=35 // pred_region
          %s1284 = smul.u32 3, %s25
          %1286 = vsyncadd %s1277, 0
          %s1287 = smul.addr %s24, 3
          %s1288 = sadd.s32 %s1284, %s1287
          %s1289 = smul.addr %s1288, 8
          %s1290 = scalar_lea.hbm %s4, %s1289
          %s1292 = sshll.u32 %s1280, 4
          %s1293 = int_to_ptr.vmem [resolvable:$true] %s1292
          %s1294 = sshll.u32 %s1290, 4
          %s1295 = int_to_ptr.hbm [resolvable:$true] %s1294
          %1297 = dma.vmem_to_hbm [thread:$0]  %s1293, 384, %s1295, %s1277
        $region56: #{tpu_custom_call.1} parent=35 // pred_fallthru
          _
      $region36: #{tpu_custom_call.1} parent=5 // pred_fallthru
        _
      %p1298 = scmp.le.s32.totalorder 2, %s15
      // Predicated region
      $region57: #{tpu_custom_call.1} parent=5 // pred_check
        %p1299 = pneg %p1298
      $region58: #{tpu_custom_call.1} parent=5 // pred_check_branch
        %1301 = sbr.rel (%p1299) target = $region60
      $region59: #{tpu_custom_call.1} parent=5 // pred_region
        %s1302 = ssub.s32 %s15, 2
        // Predicated region
        $region61: #{tpu_custom_call.1} parent=59 // pred_check
          %p1303 = pneg %p160
        $region62: #{tpu_custom_call.1} parent=59 // pred_check_branch
          %1305 = sbr.rel (%p1303) target = $region64
        $region63: #{tpu_custom_call.1} parent=59 // pred_region
          %s1306 = sand.u32 %s145, 1
          %s1307 = scalar_lea.sflag [#allocation5], %s1306
          %s1308 = sand.u32 %s145, 1
          %s1309 = smul.addr %s1308, 24
          %s1310 = scalar_lea.vmem [#allocation10], %s1309
          %1312 = dma.done %s1307, 384
        $region64: #{tpu_custom_call.1} parent=59 // pred_fallthru
          _
      $region60: #{tpu_custom_call.1} parent=5 // pred_fallthru
        _
    $region6: #{tpu_custom_call.1} parent=1 // loop_footer
      %s19 = sadd.s32 1, %s15
    $region7: #{tpu_custom_call.1} parent=1 // loop_footer_branch
      %14 = sbr.rel target = $region3
    $region8: #{tpu_custom_call.1} parent=1 // loop_exit
      _
    %1313 = vsyncpa [#allocation4], 1
    %s1314 = scalar_lea.sflag [#allocation4], 1
    %1315 = vsyncpa %s1314, 1
    %1316 = vsyncpa [#allocation7], 1
    %1317 = vsyncpa [#allocation5], 1
    %s1318 = scalar_lea.sflag [#allocation5], 1
    %1319 = vsyncpa %s1318, 1

// kernel: tpu_custom_call.1
$region0: #{tpu_custom_call.1}
  #allocation0 [shape = 'u32[]', space=smem, size = 0x4, offset = 0x4, fixed_abs, tag = 'smem constant byte address 0x4 - core index']
  #allocation1 [shape = 'u32[72,128]{1,0:T(1,128)}', space=vmem, size = 0x9000, scoped, tag = 'internal scratch']
  #allocation2 [shape = 'f32[72,384]{1,0:T(8,128)}', space=vmem, size = 0x1b000, scoped, tag = 'scratch operand']
  %s0 = inlined_call_operand.hbm [shape: f32[8,72], index: 0, kind: input, shape index: {}]
  %s1 = inlined_call_operand.hbm [shape: f32[8,128], index: 1, kind: input, shape index: {}]
  %s2 = inlined_call_operand.hbm [shape: f32[2,1,8,512], index: 2, kind: input, shape index: {}]
  %s3 = inlined_call_operand.hbm [shape: f32[2,1,8,512], index: 3, kind: input, shape index: {}]
  %s4 = inlined_call_operand.hbm [shape: f32[2,8,384], index: 4, kind: output, shape index: {}]
  %s5 = sld [smem:[#allocation0]]
  $region65: #{tpu_custom_call.1} parent=0
    _
  %s7 = ssub.s32 1, %s5
  %s8 = scalar_select 0, %s7, %s5
  $region1: #{tpu_custom_call.1} parent=0
    #allocation3 [shape = 'u8[4096]{0}', space=vmem, size = 0x1000, scoped, tag = 'input window, operand 0, single buffered']
    #allocation4 [shape = 's32[2]{0}', space=sflag, size = 0x8, scoped, tag = 'scoped memory for tpu_custom_call.1']
    #allocation5 [shape = 's32[2]{0}', space=sflag, size = 0x8, scoped, tag = 'scoped memory for tpu_custom_call.1']
    #allocation6 [shape = 'u8[4096]{0}', space=vmem, size = 0x1000, scoped, tag = 'input window, operand 1, single buffered']
    #allocation7 [shape = 's32[1]{0}', space=sflag, size = 0x4, scoped, tag = 'scoped memory for tpu_custom_call.1']
    #allocation8 [shape = 'u8[24576]{0}', space=vmem, size = 0x6000, scoped, tag = 'input window, operand 2']
    #allocation9 [shape = 'u8[8192]{0}', space=vmem, size = 0x2000, scoped, tag = 'input window, operand 3']
    #allocation10 [shape = 'u8[24576]{0}', space=vmem, size = 0x6000, scoped, tag = 'output window, operand 0']
    %9 = vsyncpa [#allocation4], 0
    %10 = vsyncpa [#allocation7], 0
    %11 = vsyncpa [#allocation5], 0
    %s12 = scalar_lea.sflag [#allocation5], 1
    %13 = vsyncpa %s12, 0
    loop: start=0, step=1, limit=4
    $region2: #{tpu_custom_call.1} parent=1 // loop_pre_header
      _
    $region3: #{tpu_custom_call.1} parent=1 // loop_header
      %s15 = sphi 0, %s19
      %p16 = scmp.ge.s32.totalorder %s15, 4
      %s22 = sphi 0, %s34
      %s23 = sphi 0, %s30
      %s24 = sphi 0, %s22
      %s25 = sphi 0, %s23
      %s26 = sphi 0, %s24
      %s27 = sphi 0, %s25
      %s35 = sphi 0, %s35
      %s37 = sphi 0, %s35
      %s38 = sphi 0, %s37
      %s52 = sphi 0, %s38
      %s56 = sphi 0, %s56
      %s58 = sphi 0, %s56
      %s59 = sphi 0, %s58
      %s73 = sphi 0, %s59
      %s81 = sphi 0, %s83
      %s84 = sphi 0, %s81
      %s85 = sphi 0, %s84
      %s101 = sphi 0, %s85
      %s113 = sphi 0, %s115
      %s116 = sphi 0, %s113
      %s117 = sphi 0, %s116
      %s133 = sphi 0, %s117
      %s141 = sphi 0, %s143
      %s144 = sphi 0, %s141
      %s145 = sphi 0, %s144
      %s161 = sphi 0, %s145
    $region4: #{tpu_custom_call.1} parent=1 // loop_header_branch
      %18 = sbr.rel (%p16) target = $region8
    $region5: #{tpu_custom_call.1} parent=1 // loop_body
      %s20 = ssub.s32 %s15, 1
      %s21 = ssub.s32 %s15, 2
      %s28 = sadd.s32 1, %s23
      %p29 = scmp.ge.s32.totalorder %s28, 1
      %s30 = scalar_select %p29, 0, %s28
      %s31 = sadd.s32 1, %s22
      %s32 = scalar_select %p29, %s31, %s22
      %p33 = scmp.ge.s32.totalorder %s32, 2
      %s34 = scalar_select %p33, 0, %s32
      %s36 = sadd.s32 %s35, 1
      %p39 = scmp.eq.s32.totalorder %s15, 1
      %p40 = scmp.ne.s32.totalorder %s35, %s37
      %p41 = scmp.eq.s32.totalorder %s15, 0
      %p42 = por %p40, %p41
      %p43 = scmp.ne.s32.totalorder %s35, %s37
      %p44 = scmp.eq.s32.totalorder %s20, 1
      %p45 = por %p43, %p44
      %p46 = scmp.ne.s32.totalorder %s37, %s38
      %p47 = scmp.eq.s32.totalorder %s20, 0
      %p48 = por %p46, %p47
      %p49 = scmp.ne.s32.totalorder %s37, %s38
      %p50 = scmp.eq.s32.totalorder %s21, 1
      %p51 = por %p49, %p50
      %p53 = scmp.ne.s32.totalorder %s38, %s52
      %p54 = scmp.eq.s32.totalorder %s21, 0
      %p55 = por %p53, %p54
      %s57 = sadd.s32 %s56, 1
      %p60 = scmp.eq.s32.totalorder %s15, 1
      %p61 = scmp.ne.s32.totalorder %s56, %s58
      %p62 = scmp.eq.s32.totalorder %s15, 0
      %p63 = por %p61, %p62
      %p64 = scmp.ne.s32.totalorder %s56, %s58
      %p65 = scmp.eq.s32.totalorder %s20, 1
      %p66 = por %p64, %p65
      %p67 = scmp.ne.s32.totalorder %s58, %s59
      %p68 = scmp.eq.s32.totalorder %s20, 0
      %p69 = por %p67, %p68
      %p70 = scmp.ne.s32.totalorder %s58, %s59
      %p71 = scmp.eq.s32.totalorder %s21, 1
      %p72 = por %p70, %p71
      %p74 = scmp.ne.s32.totalorder %s59, %s73
      %p75 = scmp.eq.s32.totalorder %s21, 0
      %p76 = por %p74, %p75
      %s77 = ssub.s32 %s22, %s34
      %s78 = ssub.s32 %s23, %s30
      %s79 = sor.u32 %s77, %s78
      %p80 = scmp.eq.s32.totalorder %s79, 0
      %s82 = sadd.s32 %s81, 1
      %s83 = scalar_select %p80, %s81, %s82
      %p86 = pneg %p80
      %p87 = scmp.eq.s32.totalorder %s15, 1
      %p88 = por %p86, %p87
      %p89 = scmp.ne.s32.totalorder %s81, %s84
      %p90 = scmp.eq.s32.totalorder %s15, 0
      %p91 = por %p89, %p90
      %p92 = scmp.ne.s32.totalorder %s81, %s84
      %p93 = scmp.eq.s32.totalorder %s20, 1
      %p94 = por %p92, %p93
      %p95 = scmp.ne.s32.totalorder %s84, %s85
      %p96 = scmp.eq.s32.totalorder %s20, 0
      %p97 = por %p95, %p96
      %p98 = scmp.ne.s32.totalorder %s84, %s85
      %p99 = scmp.eq.s32.totalorder %s21, 1
      %p100 = por %p98, %p99
      %p102 = scmp.ne.s32.totalorder %s85, %s101
      %p103 = scmp.eq.s32.totalorder %s21, 0
      %p104 = por %p102, %p103
      %s105 = sadd.s32 %s23, 1
      %s106 = smul.u32 %s105, 3
      %s107 = sadd.s32 %s30, 1
      %s108 = smul.u32 %s107, 3
      %s109 = ssub.s32 %s22, %s34
      %s110 = ssub.s32 %s106, %s108
      %s111 = sor.u32 %s109, %s110
      %p112 = scmp.eq.s32.totalorder %s111, 0
      %s114 = sadd.s32 %s113, 1
      %s115 = scalar_select %p112, %s113, %s114
      %p118 = pneg %p112
      %p119 = scmp.eq.s32.totalorder %s15, 1
      %p120 = por %p118, %p119
      %p121 = scmp.ne.s32.totalorder %s113, %s116
      %p122 = scmp.eq.s32.totalorder %s15, 0
      %p123 = por %p121, %p122
      %p124 = scmp.ne.s32.totalorder %s113, %s116
      %p125 = scmp.eq.s32.totalorder %s20, 1
      %p126 = por %p124, %p125
      %p127 = scmp.ne.s32.totalorder %s116, %s117
      %p128 = scmp.eq.s32.totalorder %s20, 0
      %p129 = por %p127, %p128
      %p130 = scmp.ne.s32.totalorder %s116, %s117
      %p131 = scmp.eq.s32.totalorder %s21, 1
      %p132 = por %p130, %p131
      %p134 = scmp.ne.s32.totalorder %s117, %s133
      %p135 = scmp.eq.s32.totalorder %s21, 0
      %p136 = por %p134, %p135
      %s137 = ssub.s32 %s22, %s34
      %s138 = ssub.s32 %s23, %s30
      %s139 = sor.u32 %s137, %s138
      %p140 = scmp.eq.s32.totalorder %s139, 0
      %s142 = sadd.s32 %s141, 1
      %s143 = scalar_select %p140, %s141, %s142
      %p146 = pneg %p140
      %p147 = scmp.eq.s32.totalorder %s15, 1
      %p148 = por %p146, %p147
      %p149 = scmp.ne.s32.totalorder %s141, %s144
      %p150 = scmp.eq.s32.totalorder %s15, 0
      %p151 = por %p149, %p150
      %p152 = scmp.ne.s32.totalorder %s141, %s144
      %p153 = scmp.eq.s32.totalorder %s20, 1
      %p154 = por %p152, %p153
      %p155 = scmp.ne.s32.totalorder %s144, %s145
      %p156 = scmp.eq.s32.totalorder %s20, 0
      %p157 = por %p155, %p156
      %p158 = scmp.ne.s32.totalorder %s144, %s145
      %p159 = scmp.eq.s32.totalorder %s21, 1
      %p160 = por %p158, %p159
      %p162 = scmp.ne.s32.totalorder %s145, %s161
      %p163 = scmp.eq.s32.totalorder %s21, 0
      %p164 = por %p162, %p163
      %p165 = scmp.le.s32.totalorder 1, %s15
      %p166 = scmp.lt.s32.totalorder %s15, 3
      %p167 = pnand %p165, %p166
      %p168 = pneg %p167
      // Predicated region
      $region9: #{tpu_custom_call.1} parent=5 // pred_check
        _
      $region10: #{tpu_custom_call.1} parent=5 // pred_check_branch
        %170 = sbr.rel (%p167) target = $region12
      $region11: #{tpu_custom_call.1} parent=5 // pred_region
        %s171 = ssub.s32 %s15, 1
        // Predicated region
        $region13: #{tpu_custom_call.1} parent=11 // pred_check
          %p172 = pneg %p48
        $region14: #{tpu_custom_call.1} parent=11 // pred_check_branch
          %174 = sbr.rel (%p172) target = $region16
        $region15: #{tpu_custom_call.1} parent=11 // pred_region
          %176 = vsyncadd [#allocation4], 0
          %s178 = sshll.u32 %s0, 4
          %s179 = int_to_ptr.hbm [resolvable:$true] %s178
          %s180 = sshll.u32 [#allocation3], 4
          %s181 = int_to_ptr.vmem [resolvable:$true] %s180
          %183 = dma.hbm_to_vmem [thread:$0]  %s179, 128, %s181, [#allocation4]
        $region16: #{tpu_custom_call.1} parent=11 // pred_fallthru
          _
        // Predicated region
        $region17: #{tpu_custom_call.1} parent=11 // pred_check
          %p184 = pneg %p69
        $region18: #{tpu_custom_call.1} parent=11 // pred_check_branch
          %186 = sbr.rel (%p184) target = $region20
        $region19: #{tpu_custom_call.1} parent=11 // pred_region
          %188 = vsyncadd [#allocation7], 0
          %s190 = sshll.u32 %s1, 4
          %s191 = int_to_ptr.hbm [resolvable:$true] %s190
          %s192 = sshll.u32 [#allocation6], 4
          %s193 = int_to_ptr.vmem [resolvable:$true] %s192
          %195 = dma.hbm_to_vmem [thread:$0]  %s191, 128, %s193, [#allocation7]
        $region20: #{tpu_custom_call.1} parent=11 // pred_fallthru
          _
      $region12: #{tpu_custom_call.1} parent=5 // pred_fallthru
        _
      %p196 = scmp.lt.s32.totalorder %s15, 2
      // Predicated region
      $region21: #{tpu_custom_call.1} parent=5 // pred_check
        %p197 = pneg %p196
      $region22: #{tpu_custom_call.1} parent=5 // pred_check_branch
        %199 = sbr.rel (%p197) target = $region24
      $region23: #{tpu_custom_call.1} parent=5 // pred_region
        // Predicated region
        $region25: #{tpu_custom_call.1} parent=23 // pred_check
          %p200 = pneg %p91
        $region26: #{tpu_custom_call.1} parent=23 // pred_check_branch
          %202 = sbr.rel (%p200) target = $region28
        $region27: #{tpu_custom_call.1} parent=23 // pred_region
          %s203 = sand.u32 %s15, 1
          %s204 = scalar_lea.sflag [#allocation4], %s203
          %s205 = sand.u32 %s81, 1
          %s206 = smul.addr %s205, 24
          %s207 = scalar_lea.vmem [#allocation8], %s206
          %s208 = smul.u32 3, %s23
          %s209 = ssub.s32 4, %s208
          %p210 = scmp.lt.s32.totalorder %s209, 3
          %s211 = scalar_select %p210, %s209, 3
          %s212 = smul.u32 8, %s211
          %s213 = ssub.s32 24, %s212
          %s214 = sshll.u32 %s213, 4
          %215 = vsyncadd %s204, %s214
          %p216 = scmp.ne.s32.totalorder 0, %s212
          %s217 = smul.addr %s22, 4
          %s218 = sadd.s32 %s208, %s217
          %s219 = smul.addr %s218, 8
          %s220 = scalar_lea.hbm %s2, %s219
          %s221 = smul.u32 %s211, 8
          %s222 = sshll.u32 %s221, 4
          %s223 = sshll.u32 %s220, 4
          %s224 = int_to_ptr.hbm [resolvable:$true] %s223
          %s225 = sshll.u32 %s207, 4
          %s226 = int_to_ptr.vmem [resolvable:$true] %s225
          %228 = dma.hbm_to_vmem [thread:$0]  (%p216), %s224, %s222, %s226, %s204
        $region28: #{tpu_custom_call.1} parent=23 // pred_fallthru
          _
        // Predicated region
        $region29: #{tpu_custom_call.1} parent=23 // pred_check
          %p229 = pneg %p123
        $region30: #{tpu_custom_call.1} parent=23 // pred_check_branch
          %231 = sbr.rel (%p229) target = $region32
        $region31: #{tpu_custom_call.1} parent=23 // pred_region
          %s232 = sand.u32 %s15, 1
          %s233 = scalar_lea.sflag [#allocation4], %s232
          %s234 = sand.u32 %s113, 1
          %s235 = smul.addr %s234, 8
          %s236 = scalar_lea.vmem [#allocation9], %s235
          %s237 = sadd.s32 %s23, 1
          %s238 = smul.u32 %s237, 3
          %240 = vsyncadd %s233, 0
          %s241 = smul.addr %s22, 4
          %s242 = sadd.s32 %s238, %s241
          %s243 = smul.addr %s242, 8
          %s244 = scalar_lea.hbm %s3, %s243
          %s246 = sshll.u32 %s244, 4
          %s247 = int_to_ptr.hbm [resolvable:$true] %s246
          %s248 = sshll.u32 %s236, 4
          %s249 = int_to_ptr.vmem [resolvable:$true] %s248
          %251 = dma.hbm_to_vmem [thread:$0]  %s247, 128, %s249, %s233
        $region32: #{tpu_custom_call.1} parent=23 // pred_fallthru
          _
      $region24: #{tpu_custom_call.1} parent=5 // pred_fallthru
        _
      %p252 = scmp.le.s32.totalorder 1, %s15
      %p253 = scmp.lt.s32.totalorder %s15, 3
      %p254 = pnand %p252, %p253
      %p255 = pneg %p254
      // Predicated region
      $region33: #{tpu_custom_call.1} parent=5 // pred_check
        _
      $region34: #{tpu_custom_call.1} parent=5 // pred_check_branch
        %257 = sbr.rel (%p254) target = $region36
      $region35: #{tpu_custom_call.1} parent=5 // pred_region
        %s258 = ssub.s32 %s15, 1
        // Predicated region
        $region37: #{tpu_custom_call.1} parent=35 // pred_check
          %p259 = pneg %p48
        $region38: #{tpu_custom_call.1} parent=35 // pred_check_branch
          %261 = sbr.rel (%p259) target = $region40
        $region39: #{tpu_custom_call.1} parent=35 // pred_region
          %263 = dma.done [#allocation4], 128
        $region40: #{tpu_custom_call.1} parent=35 // pred_fallthru
          _
        // Predicated region
        $region41: #{tpu_custom_call.1} parent=35 // pred_check
          %p264 = pneg %p69
        $region42: #{tpu_custom_call.1} parent=35 // pred_check_branch
          %266 = sbr.rel (%p264) target = $region44
        $region43: #{tpu_custom_call.1} parent=35 // pred_region
          %268 = dma.done [#allocation7], 128
        $region44: #{tpu_custom_call.1} parent=35 // pred_fallthru
          _
        %s269 = sand.u32 %s20, 1
        %s270 = scalar_lea.sflag [#allocation4], %s269
        %s271 = sand.u32 %s84, 1
        %s272 = smul.addr %s271, 24
        %s273 = scalar_lea.vmem [#allocation8], %s272
        // Predicated region
        $region45: #{tpu_custom_call.1} parent=35 // pred_check
          %p274 = pneg %p97
        $region46: #{tpu_custom_call.1} parent=35 // pred_check_branch
          %276 = sbr.rel (%p274) target = $region48
        $region47: #{tpu_custom_call.1} parent=35 // pred_region
          %278 = dma.done %s270, 384
        $region48: #{tpu_custom_call.1} parent=35 // pred_fallthru
          _
        %s279 = sand.u32 %s20, 1
        %s280 = scalar_lea.sflag [#allocation4], %s279
        %s281 = sand.u32 %s116, 1
        %s282 = smul.addr %s281, 8
        %s283 = scalar_lea.vmem [#allocation9], %s282
        // Predicated region
        $region49: #{tpu_custom_call.1} parent=35 // pred_check
          %p284 = pneg %p129
        $region50: #{tpu_custom_call.1} parent=35 // pred_check_branch
          %286 = sbr.rel (%p284) target = $region52
        $region51: #{tpu_custom_call.1} parent=35 // pred_region
          %288 = dma.done %s280, 128
        $region52: #{tpu_custom_call.1} parent=35 // pred_fallthru
          _
        %p289 = pneg %p48
        %p290 = pneg %p45
        %p291 = pneg %p69
        %p292 = pneg %p66
        %s293 = sand.u32 %s20, 1
        %s294 = scalar_lea.sflag [#allocation4], %s293
        %s295 = sand.u32 %s84, 1
        %s296 = smul.addr %s295, 24
        %s297 = scalar_lea.vmem [#allocation8], %s296
        %p298 = pneg %p97
        %p299 = pneg %p94
        %s300 = sand.u32 %s20, 1
        %s301 = scalar_lea.sflag [#allocation4], %s300
        %s302 = sand.u32 %s116, 1
        %s303 = smul.addr %s302, 8
        %s304 = scalar_lea.vmem [#allocation9], %s303
        %p305 = pneg %p129
        %p306 = pneg %p126
        %p307 = pneg %p157
        %p308 = pneg %p154
        %s309 = sand.u32 %s144, 1
        %s310 = scalar_lea.sflag [#allocation5], %s309
        %s311 = sand.u32 %s144, 1
        %s312 = smul.addr %s311, 24
        %s313 = scalar_lea.vmem [#allocation10], %s312
        %s314 = smul.u32 3, %s25
        %s315 = ssub.s32 4, %s314
        %p316 = scmp.lt.s32.totalorder %s315, 3
        %s317 = scalar_select %p316, %s315, 3
        %s318 = smul.u32 8, %s317
        %s319 = sadd.s32 %s25, 1
        %s320 = smul.u32 %s319, 3
        %s321 = smul.u32 3, %s25
        %v322 = vld [vmem:[%s273] sm:$0xff]
        %v323 = vld [vmem:[%s273 + $0x8] sm:$0xff]
        %v324 = vld [vmem:[%s273 + $0x10] sm:$0xff]
        %v325 = vld [vmem:[%s283] sm:$0xff]
        %326 = vst [vmem:[#allocation2] sm:$0xff] %v322
        %327 = vst [vmem:[#allocation2 + $0x8] sm:$0xff] %v323
        %328 = vst [vmem:[#allocation2 + $0x10] sm:$0xff] %v324
        %332 = vrot.lane.b32.xlu0 %v322, 127
        %v333 = vpop.permute.xlu0 %332
        %334 = vrot.lane.b32.xlu0 %v323, 127
        %v335 = vpop.permute.xlu0 %334
        %336 = vrot.lane.b32.xlu0 %v324, 127
        %v337 = vpop.permute.xlu0 %336
        %vm338 = vcmask 1039360
        %v339 = vsel %vm338, %v333, %v335
        %v340 = vsel %vm338, %v335, %v337
        %345 = vrot.lane.b32.xlu0 %v325, 127
        %v346 = vpop.permute.xlu0 %345
        %v348 = vsel %vm338, %v337, %v346
        %349 = vst [vmem:[#allocation2 + $0x18] sm:$0xff] %v339
        %350 = vst [vmem:[#allocation2 + $0x20] sm:$0xff] %v340
        %351 = vst [vmem:[#allocation2 + $0x28] sm:$0xff] %v348
        %352 = vrot.lane.b32.xlu0 %v322, 126
        %v353 = vpop.permute.xlu0 %352
        %354 = vrot.lane.b32.xlu0 %v323, 126
        %v355 = vpop.permute.xlu0 %354
        %356 = vrot.lane.b32.xlu0 %v324, 126
        %v357 = vpop.permute.xlu0 %356
        %vm358 = vcmask 1031168
        %v359 = vsel %vm358, %v353, %v355
        %v360 = vsel %vm358, %v355, %v357
        %364 = vrot.lane.b32.xlu0 %v325, 126
        %v365 = vpop.permute.xlu0 %364
        %v367 = vsel %vm358, %v357, %v365
        %368 = vst [vmem:[#allocation2 + $0x30] sm:$0xff] %v359
        %369 = vst [vmem:[#allocation2 + $0x38] sm:$0xff] %v360
        %370 = vst [vmem:[#allocation2 + $0x40] sm:$0xff] %v367
        %371 = vrot.lane.b32.xlu0 %v322, 110
        %v372 = vpop.permute.xlu0 %371
        %373 = vrot.lane.b32.xlu0 %v323, 110
        %v374 = vpop.permute.xlu0 %373
        %375 = vrot.lane.b32.xlu0 %v324, 110
        %v376 = vpop.permute.xlu0 %375
        %vm377 = vcmask 900096
        %v378 = vsel %vm377, %v372, %v374
        %v379 = vsel %vm377, %v374, %v376
        %383 = vrot.lane.b32.xlu0 %v325, 110
        %v384 = vpop.permute.xlu0 %383
        %v386 = vsel %vm377, %v376, %v384
        %387 = vst [vmem:[#allocation2 + $0x48] sm:$0xff] %v378
        %388 = vst [vmem:[#allocation2 + $0x50] sm:$0xff] %v379
        %389 = vst [vmem:[#allocation2 + $0x58] sm:$0xff] %v386
        %390 = vrot.lane.b32.xlu0 %v322, 109
        %v391 = vpop.permute.xlu0 %390
        %392 = vrot.lane.b32.xlu0 %v323, 109
        %v393 = vpop.permute.xlu0 %392
        %394 = vrot.lane.b32.xlu0 %v324, 109
        %v395 = vpop.permute.xlu0 %394
        %vm396 = vcmask 891904
        %v397 = vsel %vm396, %v391, %v393
        %v398 = vsel %vm396, %v393, %v395
        %402 = vrot.lane.b32.xlu0 %v325, 109
        %v403 = vpop.permute.xlu0 %402
        %v405 = vsel %vm396, %v395, %v403
        %406 = vst [vmem:[#allocation2 + $0x60] sm:$0xff] %v397
        %407 = vst [vmem:[#allocation2 + $0x68] sm:$0xff] %v398
        %408 = vst [vmem:[#allocation2 + $0x70] sm:$0xff] %v405
        %409 = vrot.lane.b32.xlu0 %v322, 108
        %v410 = vpop.permute.xlu0 %409
        %411 = vrot.lane.b32.xlu0 %v323, 108
        %v412 = vpop.permute.xlu0 %411
        %413 = vrot.lane.b32.xlu0 %v324, 108
        %v414 = vpop.permute.xlu0 %413
        %vm415 = vcmask 883712
        %v416 = vsel %vm415, %v410, %v412
        %v417 = vsel %vm415, %v412, %v414
        %421 = vrot.lane.b32.xlu0 %v325, 108
        %v422 = vpop.permute.xlu0 %421
        %v424 = vsel %vm415, %v414, %v422
        %425 = vst [vmem:[#allocation2 + $0x78] sm:$0xff] %v416
        %426 = vst [vmem:[#allocation2 + $0x80] sm:$0xff] %v417
        %427 = vst [vmem:[#allocation2 + $0x88] sm:$0xff] %v424
        %428 = vrot.lane.b32.xlu0 %v322, 92
        %v429 = vpop.permute.xlu0 %428
        %430 = vrot.lane.b32.xlu0 %v323, 92
        %v431 = vpop.permute.xlu0 %430
        %432 = vrot.lane.b32.xlu0 %v324, 92
        %v433 = vpop.permute.xlu0 %432
        %vm434 = vcmask 752640
        %v435 = vsel %vm434, %v429, %v431
        %v436 = vsel %vm434, %v431, %v433
        %440 = vrot.lane.b32.xlu0 %v325, 92
        %v441 = vpop.permute.xlu0 %440
        %v443 = vsel %vm434, %v433, %v441
        %444 = vst [vmem:[#allocation2 + $0x90] sm:$0xff] %v435
        %445 = vst [vmem:[#allocation2 + $0x98] sm:$0xff] %v436
        %446 = vst [vmem:[#allocation2 + $0xa0] sm:$0xff] %v443
        %447 = vrot.lane.b32.xlu0 %v322, 91
        %v448 = vpop.permute.xlu0 %447
        %449 = vrot.lane.b32.xlu0 %v323, 91
        %v450 = vpop.permute.xlu0 %449
        %451 = vrot.lane.b32.xlu0 %v324, 91
        %v452 = vpop.permute.xlu0 %451
        %vm453 = vcmask 744448
        %v454 = vsel %vm453, %v448, %v450
        %v455 = vsel %vm453, %v450, %v452
        %459 = vrot.lane.b32.xlu0 %v325, 91
        %v460 = vpop.permute.xlu0 %459
        %v462 = vsel %vm453, %v452, %v460
        %463 = vst [vmem:[#allocation2 + $0xa8] sm:$0xff] %v454
        %464 = vst [vmem:[#allocation2 + $0xb0] sm:$0xff] %v455
        %465 = vst [vmem:[#allocation2 + $0xb8] sm:$0xff] %v462
        %466 = vrot.lane.b32.xlu0 %v322, 90
        %v467 = vpop.permute.xlu0 %466
        %468 = vrot.lane.b32.xlu0 %v323, 90
        %v469 = vpop.permute.xlu0 %468
        %470 = vrot.lane.b32.xlu0 %v324, 90
        %v471 = vpop.permute.xlu0 %470
        %vm472 = vcmask 736256
        %v473 = vsel %vm472, %v467, %v469
        %v474 = vsel %vm472, %v469, %v471
        %478 = vrot.lane.b32.xlu0 %v325, 90
        %v479 = vpop.permute.xlu0 %478
        %v481 = vsel %vm472, %v471, %v479
        %482 = vst [vmem:[#allocation2 + $0xc0] sm:$0xff] %v473
        %483 = vst [vmem:[#allocation2 + $0xc8] sm:$0xff] %v474
        %484 = vst [vmem:[#allocation2 + $0xd0] sm:$0xff] %v481
        %v485 = vld [vmem:[#allocation3] sm:$0xff]
        %v486 = vld [vmem:[#allocation2] sm:$0xff]
        %v487 = vld [vmem:[#allocation2 + $0x8] sm:$0xff]
        %v488 = vld [vmem:[#allocation2 + $0x10] sm:$0xff]
        %v489 = vld [vmem:[#allocation2 + $0x18] sm:$0xff]
        %v490 = vld [vmem:[#allocation2 + $0x20] sm:$0xff]
        %v491 = vld [vmem:[#allocation2 + $0x28] sm:$0xff]
        %v492 = vld [vmem:[#allocation2 + $0x30] sm:$0xff]
        %v493 = vld [vmem:[#allocation2 + $0x38] sm:$0xff]
        %v494 = vld [vmem:[#allocation2 + $0x40] sm:$0xff]
        %v495 = vld [vmem:[#allocation2 + $0x48] sm:$0xff]
        %v496 = vld [vmem:[#allocation2 + $0x50] sm:$0xff]
        %v497 = vld [vmem:[#allocation2 + $0x58] sm:$0xff]
        %v498 = vld [vmem:[#allocation2 + $0x60] sm:$0xff]
        %v499 = vld [vmem:[#allocation2 + $0x68] sm:$0xff]
        %v500 = vld [vmem:[#allocation2 + $0x70] sm:$0xff]
        %v501 = vld [vmem:[#allocation2 + $0x78] sm:$0xff]
        %v502 = vld [vmem:[#allocation2 + $0x80] sm:$0xff]
        %v503 = vld [vmem:[#allocation2 + $0x88] sm:$0xff]
        %v504 = vld [vmem:[#allocation2 + $0x90] sm:$0xff]
        %v505 = vld [vmem:[#allocation2 + $0x98] sm:$0xff]
        %v506 = vld [vmem:[#allocation2 + $0xa0] sm:$0xff]
        %v507 = vld [vmem:[#allocation2 + $0xa8] sm:$0xff]
        %v508 = vld [vmem:[#allocation2 + $0xb0] sm:$0xff]
        %v509 = vld [vmem:[#allocation2 + $0xb8] sm:$0xff]
        %v510 = vld [vmem:[#allocation2 + $0xc0] sm:$0xff]
        %v511 = vld [vmem:[#allocation2 + $0xc8] sm:$0xff]
        %v512 = vld [vmem:[#allocation2 + $0xd0] sm:$0xff]
        %v513 = vld [vmem:[#allocation6] sm:$0xff]
        %515 = vset.pattern.permute.xlu0 0
        %516 = vperm.xlu0 %515, %v513
        %v517 = vpop.permute.xlu0 %516
        %vm519 = vcmask 588800
        %v521 = vsel %vm519, %v485, 0
        %523 = vmatpush.msra.mxu0 0.0
        %524 = vmatpush.msra.mxu0 0.0
        %525 = vmatpush.msra.mxu0 0.0
        %526 = vmatpush.msra.mxu0 0.0
        %527 = vmatpush.msra.mxu0 0.0
        %528 = vmatpush.msra.mxu0 0.0
        %529 = vmatpush.msra.mxu0 0.0
        %v530 = vand.u32 %v510, 4294901760
        %531 = vmatpush.msra.mxu0 %v530
        %v532 = vand.u32 %v507, 4294901760
        %533 = vmatpush.msra.mxu0 %v532
        %v534 = vand.u32 %v504, 4294901760
        %535 = vmatpush.msra.mxu0 %v534
        %v536 = vand.u32 %v501, 4294901760
        %537 = vmatpush.msra.mxu0 %v536
        %v538 = vand.u32 %v498, 4294901760
        %539 = vmatpush.msra.mxu0 %v538
        %v540 = vand.u32 %v495, 4294901760
        %541 = vmatpush.msra.mxu0 %v540
        %v542 = vand.u32 %v492, 4294901760
        %543 = vmatpush.msra.mxu0 %v542
        %v544 = vand.u32 %v489, 4294901760
        %545 = vmatpush.msra.mxu0 %v544
        %v546 = vand.u32 %v486, 4294901760
        %547 = vmatpush.msra.mxu0 %v546
        %v548 = vand.u32 %v521, 4294901760
        %v549 = vsub.f32 %v521, %v548
        %v550 = vand.u32 %v549, 4294901760
        %v551 = vsub.f32 %v549, %v550
        %v552 = vand.u32 %v551, 4294901760
        %553 = vmatmul.f32.gmra.mxu0 %v552
        %v554 = vpop.f32.mrf.mxu0
        %v555 = vadd.f32 %v517, %v554
        %556 = vdwg.mxu0
        %557 = vmatpush.msra.mxu0 0.0
        %558 = vmatpush.msra.mxu0 0.0
        %559 = vmatpush.msra.mxu0 0.0
        %560 = vmatpush.msra.mxu0 0.0
        %561 = vmatpush.msra.mxu0 0.0
        %562 = vmatpush.msra.mxu0 0.0
        %563 = vmatpush.msra.mxu0 0.0
        %v564 = vand.u32 %v510, 4294901760
        %v565 = vsub.f32 %v510, %v564
        %v566 = vand.u32 %v565, 4294901760
        %v567 = vsub.f32 %v565, %v566
        %v568 = vand.u32 %v567, 4294901760
        %569 = vmatpush.msra.mxu0 %v568
        %v570 = vand.u32 %v507, 4294901760
        %v571 = vsub.f32 %v507, %v570
        %v572 = vand.u32 %v571, 4294901760
        %v573 = vsub.f32 %v571, %v572
        %v574 = vand.u32 %v573, 4294901760
        %575 = vmatpush.msra.mxu0 %v574
        %v576 = vand.u32 %v504, 4294901760
        %v577 = vsub.f32 %v504, %v576
        %v578 = vand.u32 %v577, 4294901760
        %v579 = vsub.f32 %v577, %v578
        %v580 = vand.u32 %v579, 4294901760
        %581 = vmatpush.msra.mxu0 %v580
        %v582 = vand.u32 %v501, 4294901760
        %v583 = vsub.f32 %v501, %v582
        %v584 = vand.u32 %v583, 4294901760
        %v585 = vsub.f32 %v583, %v584
        %v586 = vand.u32 %v585, 4294901760
        %587 = vmatpush.msra.mxu0 %v586
        %v588 = vand.u32 %v498, 4294901760
        %v589 = vsub.f32 %v498, %v588
        %v590 = vand.u32 %v589, 4294901760
        %v591 = vsub.f32 %v589, %v590
        %v592 = vand.u32 %v591, 4294901760
        %593 = vmatpush.msra.mxu0 %v592
        %v594 = vand.u32 %v495, 4294901760
        %v595 = vsub.f32 %v495, %v594
        %v596 = vand.u32 %v595, 4294901760
        %v597 = vsub.f32 %v595, %v596
        %v598 = vand.u32 %v597, 4294901760
        %599 = vmatpush.msra.mxu0 %v598
        %v600 = vand.u32 %v492, 4294901760
        %v601 = vsub.f32 %v492, %v600
        %v602 = vand.u32 %v601, 4294901760
        %v603 = vsub.f32 %v601, %v602
        %v604 = vand.u32 %v603, 4294901760
        %605 = vmatpush.msra.mxu0 %v604
        %v606 = vand.u32 %v489, 4294901760
        %v607 = vsub.f32 %v489, %v606
        %v608 = vand.u32 %v607, 4294901760
        %v609 = vsub.f32 %v607, %v608
        %v610 = vand.u32 %v609, 4294901760
        %611 = vmatpush.msra.mxu0 %v610
        %v612 = vand.u32 %v486, 4294901760
        %v613 = vsub.f32 %v486, %v612
        %v614 = vand.u32 %v613, 4294901760
        %v615 = vsub.f32 %v613, %v614
        %v616 = vand.u32 %v615, 4294901760
        %617 = vmatpush.msra.mxu0 %v616
        %v618 = vand.u32 %v521, 4294901760
        %619 = vmatmul.f32.gmra.mxu0 %v618
        %v620 = vpop.f32.mrf.mxu0
        %v621 = vadd.f32 %v555, %v620
        %622 = vdwg.mxu0
        %623 = vmatpush.msra.mxu0 0.0
        %624 = vmatpush.msra.mxu0 0.0
        %625 = vmatpush.msra.mxu0 0.0
        %626 = vmatpush.msra.mxu0 0.0
        %627 = vmatpush.msra.mxu0 0.0
        %628 = vmatpush.msra.mxu0 0.0
        %629 = vmatpush.msra.mxu0 0.0
        %v630 = vand.u32 %v510, 4294901760
        %v631 = vsub.f32 %v510, %v630
        %632 = vmatpush.msra.mxu0 %v631
        %v633 = vand.u32 %v507, 4294901760
        %v634 = vsub.f32 %v507, %v633
        %635 = vmatpush.msra.mxu0 %v634
        %v636 = vand.u32 %v504, 4294901760
        %v637 = vsub.f32 %v504, %v636
        %638 = vmatpush.msra.mxu0 %v637
        %v639 = vand.u32 %v501, 4294901760
        %v640 = vsub.f32 %v501, %v639
        %641 = vmatpush.msra.mxu0 %v640
        %v642 = vand.u32 %v498, 4294901760
        %v643 = vsub.f32 %v498, %v642
        %644 = vmatpush.msra.mxu0 %v643
        %v645 = vand.u32 %v495, 4294901760
        %v646 = vsub.f32 %v495, %v645
        %647 = vmatpush.msra.mxu0 %v646
        %v648 = vand.u32 %v492, 4294901760
        %v649 = vsub.f32 %v492, %v648
        %650 = vmatpush.msra.mxu0 %v649
        %v651 = vand.u32 %v489, 4294901760
        %v652 = vsub.f32 %v489, %v651
        %653 = vmatpush.msra.mxu0 %v652
        %v654 = vand.u32 %v486, 4294901760
        %v655 = vsub.f32 %v486, %v654
        %656 = vmatpush.msra.mxu0 %v655
        %v657 = vand.u32 %v521, 4294901760
        %v658 = vsub.f32 %v521, %v657
        %659 = vmatmul.f32.gmra.mxu0 %v658
        %v660 = vpop.f32.mrf.mxu0
        %v661 = vadd.f32 %v621, %v660
        %662 = vdwg.mxu0
        %663 = vmatpush.msra.mxu0 0.0
        %664 = vmatpush.msra.mxu0 0.0
        %665 = vmatpush.msra.mxu0 0.0
        %666 = vmatpush.msra.mxu0 0.0
        %667 = vmatpush.msra.mxu0 0.0
        %668 = vmatpush.msra.mxu0 0.0
        %669 = vmatpush.msra.mxu0 0.0
        %v670 = vand.u32 %v510, 4294901760
        %671 = vmatpush.msra.mxu0 %v670
        %v672 = vand.u32 %v507, 4294901760
        %673 = vmatpush.msra.mxu0 %v672
        %v674 = vand.u32 %v504, 4294901760
        %675 = vmatpush.msra.mxu0 %v674
        %v676 = vand.u32 %v501, 4294901760
        %677 = vmatpush.msra.mxu0 %v676
        %v678 = vand.u32 %v498, 4294901760
        %679 = vmatpush.msra.mxu0 %v678
        %v680 = vand.u32 %v495, 4294901760
        %681 = vmatpush.msra.mxu0 %v680
        %v682 = vand.u32 %v492, 4294901760
        %683 = vmatpush.msra.mxu0 %v682
        %v684 = vand.u32 %v489, 4294901760
        %685 = vmatpush.msra.mxu0 %v684
        %v686 = vand.u32 %v486, 4294901760
        %687 = vmatpush.msra.mxu0 %v686
        %v688 = vand.u32 %v521, 4294901760
        %v689 = vsub.f32 %v521, %v688
        %v690 = vand.u32 %v689, 4294901760
        %691 = vmatmul.f32.gmra.mxu0 %v690
        %v692 = vpop.f32.mrf.mxu0
        %v693 = vadd.f32 %v661, %v692
        %694 = vdwg.mxu0
        %695 = vmatpush.msra.mxu0 0.0
        %696 = vmatpush.msra.mxu0 0.0
        %697 = vmatpush.msra.mxu0 0.0
        %698 = vmatpush.msra.mxu0 0.0
        %699 = vmatpush.msra.mxu0 0.0
        %700 = vmatpush.msra.mxu0 0.0
        %701 = vmatpush.msra.mxu0 0.0
        %v702 = vand.u32 %v510, 4294901760
        %v703 = vsub.f32 %v510, %v702
        %v704 = vand.u32 %v703, 4294901760
        %705 = vmatpush.msra.mxu0 %v704
        %v706 = vand.u32 %v507, 4294901760
        %v707 = vsub.f32 %v507, %v706
        %v708 = vand.u32 %v707, 4294901760
        %709 = vmatpush.msra.mxu0 %v708
        %v710 = vand.u32 %v504, 4294901760
        %v711 = vsub.f32 %v504, %v710
        %v712 = vand.u32 %v711, 4294901760
        %713 = vmatpush.msra.mxu0 %v712
        %v714 = vand.u32 %v501, 4294901760
        %v715 = vsub.f32 %v501, %v714
        %v716 = vand.u32 %v715, 4294901760
        %717 = vmatpush.msra.mxu0 %v716
        %v718 = vand.u32 %v498, 4294901760
        %v719 = vsub.f32 %v498, %v718
        %v720 = vand.u32 %v719, 4294901760
        %721 = vmatpush.msra.mxu0 %v720
        %v722 = vand.u32 %v495, 4294901760
        %v723 = vsub.f32 %v495, %v722
        %v724 = vand.u32 %v723, 4294901760
        %725 = vmatpush.msra.mxu0 %v724
        %v726 = vand.u32 %v492, 4294901760
        %v727 = vsub.f32 %v492, %v726
        %v728 = vand.u32 %v727, 4294901760
        %729 = vmatpush.msra.mxu0 %v728
        %v730 = vand.u32 %v489, 4294901760
        %v731 = vsub.f32 %v489, %v730
        %v732 = vand.u32 %v731, 4294901760
        %733 = vmatpush.msra.mxu0 %v732
        %v734 = vand.u32 %v486, 4294901760
        %v735 = vsub.f32 %v486, %v734
        %v736 = vand.u32 %v735, 4294901760
        %737 = vmatpush.msra.mxu0 %v736
        %v738 = vand.u32 %v521, 4294901760
        %739 = vmatmul.f32.gmra.mxu0 %v738
        %v740 = vpop.f32.mrf.mxu0
        %v741 = vadd.f32 %v693, %v740
        %742 = vdwg.mxu0
        %743 = vmatpush.msra.mxu0 0.0
        %744 = vmatpush.msra.mxu0 0.0
        %745 = vmatpush.msra.mxu0 0.0
        %746 = vmatpush.msra.mxu0 0.0
        %747 = vmatpush.msra.mxu0 0.0
        %748 = vmatpush.msra.mxu0 0.0
        %749 = vmatpush.msra.mxu0 0.0
        %v750 = vand.u32 %v510, 4294901760
        %751 = vmatpush.msra.mxu0 %v750
        %v752 = vand.u32 %v507, 4294901760
        %753 = vmatpush.msra.mxu0 %v752
        %v754 = vand.u32 %v504, 4294901760
        %755 = vmatpush.msra.mxu0 %v754
        %v756 = vand.u32 %v501, 4294901760
        %757 = vmatpush.msra.mxu0 %v756
        %v758 = vand.u32 %v498, 4294901760
        %759 = vmatpush.msra.mxu0 %v758
        %v760 = vand.u32 %v495, 4294901760
        %761 = vmatpush.msra.mxu0 %v760
        %v762 = vand.u32 %v492, 4294901760
        %763 = vmatpush.msra.mxu0 %v762
        %v764 = vand.u32 %v489, 4294901760
        %765 = vmatpush.msra.mxu0 %v764
        %v766 = vand.u32 %v486, 4294901760
        %767 = vmatpush.msra.mxu0 %v766
        %v768 = vand.u32 %v521, 4294901760
        %769 = vmatmul.f32.gmra.mxu0 %v768
        %v770 = vpop.f32.mrf.mxu0
        %v771 = vadd.f32 %v741, %v770
        %772 = vdwg.mxu0
        %773 = vmatpush.msra.mxu0 0.0
        %774 = vmatpush.msra.mxu0 0.0
        %775 = vmatpush.msra.mxu0 0.0
        %776 = vmatpush.msra.mxu0 0.0
        %777 = vmatpush.msra.mxu0 0.0
        %778 = vmatpush.msra.mxu0 0.0
        %779 = vmatpush.msra.mxu0 0.0
        %v780 = vand.u32 %v511, 4294901760
        %781 = vmatpush.msra.mxu0 %v780
        %v782 = vand.u32 %v508, 4294901760
        %783 = vmatpush.msra.mxu0 %v782
        %v784 = vand.u32 %v505, 4294901760
        %785 = vmatpush.msra.mxu0 %v784
        %v786 = vand.u32 %v502, 4294901760
        %787 = vmatpush.msra.mxu0 %v786
        %v788 = vand.u32 %v499, 4294901760
        %789 = vmatpush.msra.mxu0 %v788
        %v790 = vand.u32 %v496, 4294901760
        %791 = vmatpush.msra.mxu0 %v790
        %v792 = vand.u32 %v493, 4294901760
        %793 = vmatpush.msra.mxu0 %v792
        %v794 = vand.u32 %v490, 4294901760
        %795 = vmatpush.msra.mxu0 %v794
        %v796 = vand.u32 %v487, 4294901760
        %797 = vmatpush.msra.mxu0 %v796
        %v798 = vand.u32 %v521, 4294901760
        %v799 = vsub.f32 %v521, %v798
        %v800 = vand.u32 %v799, 4294901760
        %v801 = vsub.f32 %v799, %v800
        %v802 = vand.u32 %v801, 4294901760
        %803 = vmatmul.f32.gmra.mxu0 %v802
        %v804 = vpop.f32.mrf.mxu0
        %v805 = vadd.f32 %v517, %v804
        %806 = vdwg.mxu0
        %807 = vmatpush.msra.mxu0 0.0
        %808 = vmatpush.msra.mxu0 0.0
        %809 = vmatpush.msra.mxu0 0.0
        %810 = vmatpush.msra.mxu0 0.0
        %811 = vmatpush.msra.mxu0 0.0
        %812 = vmatpush.msra.mxu0 0.0
        %813 = vmatpush.msra.mxu0 0.0
        %v814 = vand.u32 %v511, 4294901760
        %v815 = vsub.f32 %v511, %v814
        %v816 = vand.u32 %v815, 4294901760
        %v817 = vsub.f32 %v815, %v816
        %v818 = vand.u32 %v817, 4294901760
        %819 = vmatpush.msra.mxu0 %v818
        %v820 = vand.u32 %v508, 4294901760
        %v821 = vsub.f32 %v508, %v820
        %v822 = vand.u32 %v821, 4294901760
        %v823 = vsub.f32 %v821, %v822
        %v824 = vand.u32 %v823, 4294901760
        %825 = vmatpush.msra.mxu0 %v824
        %v826 = vand.u32 %v505, 4294901760
        %v827 = vsub.f32 %v505, %v826
        %v828 = vand.u32 %v827, 4294901760
        %v829 = vsub.f32 %v827, %v828
        %v830 = vand.u32 %v829, 4294901760
        %831 = vmatpush.msra.mxu0 %v830
        %v832 = vand.u32 %v502, 4294901760
        %v833 = vsub.f32 %v502, %v832
        %v834 = vand.u32 %v833, 4294901760
        %v835 = vsub.f32 %v833, %v834
        %v836 = vand.u32 %v835, 4294901760
        %837 = vmatpush.msra.mxu0 %v836
        %v838 = vand.u32 %v499, 4294901760
        %v839 = vsub.f32 %v499, %v838
        %v840 = vand.u32 %v839, 4294901760
        %v841 = vsub.f32 %v839, %v840
        %v842 = vand.u32 %v841, 4294901760
        %843 = vmatpush.msra.mxu0 %v842
        %v844 = vand.u32 %v496, 4294901760
        %v845 = vsub.f32 %v496, %v844
        %v846 = vand.u32 %v845, 4294901760
        %v847 = vsub.f32 %v845, %v846
        %v848 = vand.u32 %v847, 4294901760
        %849 = vmatpush.msra.mxu0 %v848
        %v850 = vand.u32 %v493, 4294901760
        %v851 = vsub.f32 %v493, %v850
        %v852 = vand.u32 %v851, 4294901760
        %v853 = vsub.f32 %v851, %v852
        %v854 = vand.u32 %v853, 4294901760
        %855 = vmatpush.msra.mxu0 %v854
        %v856 = vand.u32 %v490, 4294901760
        %v857 = vsub.f32 %v490, %v856
        %v858 = vand.u32 %v857, 4294901760
        %v859 = vsub.f32 %v857, %v858
        %v860 = vand.u32 %v859, 4294901760
        %861 = vmatpush.msra.mxu0 %v860
        %v862 = vand.u32 %v487, 4294901760
        %v863 = vsub.f32 %v487, %v862
        %v864 = vand.u32 %v863, 4294901760
        %v865 = vsub.f32 %v863, %v864
        %v866 = vand.u32 %v865, 4294901760
        %867 = vmatpush.msra.mxu0 %v866
        %v868 = vand.u32 %v521, 4294901760
        %869 = vmatmul.f32.gmra.mxu0 %v868
        %v870 = vpop.f32.mrf.mxu0
        %v871 = vadd.f32 %v805, %v870
        %872 = vdwg.mxu0
        %873 = vmatpush.msra.mxu0 0.0
        %874 = vmatpush.msra.mxu0 0.0
        %875 = vmatpush.msra.mxu0 0.0
        %876 = vmatpush.msra.mxu0 0.0
        %877 = vmatpush.msra.mxu0 0.0
        %878 = vmatpush.msra.mxu0 0.0
        %879 = vmatpush.msra.mxu0 0.0
        %v880 = vand.u32 %v511, 4294901760
        %v881 = vsub.f32 %v511, %v880
        %882 = vmatpush.msra.mxu0 %v881
        %v883 = vand.u32 %v508, 4294901760
        %v884 = vsub.f32 %v508, %v883
        %885 = vmatpush.msra.mxu0 %v884
        %v886 = vand.u32 %v505, 4294901760
        %v887 = vsub.f32 %v505, %v886
        %888 = vmatpush.msra.mxu0 %v887
        %v889 = vand.u32 %v502, 4294901760
        %v890 = vsub.f32 %v502, %v889
        %891 = vmatpush.msra.mxu0 %v890
        %v892 = vand.u32 %v499, 4294901760
        %v893 = vsub.f32 %v499, %v892
        %894 = vmatpush.msra.mxu0 %v893
        %v895 = vand.u32 %v496, 4294901760
        %v896 = vsub.f32 %v496, %v895
        %897 = vmatpush.msra.mxu0 %v896
        %v898 = vand.u32 %v493, 4294901760
        %v899 = vsub.f32 %v493, %v898
        %900 = vmatpush.msra.mxu0 %v899
        %v901 = vand.u32 %v490, 4294901760
        %v902 = vsub.f32 %v490, %v901
        %903 = vmatpush.msra.mxu0 %v902
        %v904 = vand.u32 %v487, 4294901760
        %v905 = vsub.f32 %v487, %v904
        %906 = vmatpush.msra.mxu0 %v905
        %v907 = vand.u32 %v521, 4294901760
        %v908 = vsub.f32 %v521, %v907
        %909 = vmatmul.f32.gmra.mxu0 %v908
        %v910 = vpop.f32.mrf.mxu0
        %v911 = vadd.f32 %v871, %v910
        %912 = vdwg.mxu0
        %913 = vmatpush.msra.mxu0 0.0
        %914 = vmatpush.msra.mxu0 0.0
        %915 = vmatpush.msra.mxu0 0.0
        %916 = vmatpush.msra.mxu0 0.0
        %917 = vmatpush.msra.mxu0 0.0
        %918 = vmatpush.msra.mxu0 0.0
        %919 = vmatpush.msra.mxu0 0.0
        %v920 = vand.u32 %v511, 4294901760
        %921 = vmatpush.msra.mxu0 %v920
        %v922 = vand.u32 %v508, 4294901760
        %923 = vmatpush.msra.mxu0 %v922
        %v924 = vand.u32 %v505, 4294901760
        %925 = vmatpush.msra.mxu0 %v924
        %v926 = vand.u32 %v502, 4294901760
        %927 = vmatpush.msra.mxu0 %v926
        %v928 = vand.u32 %v499, 4294901760
        %929 = vmatpush.msra.mxu0 %v928
        %v930 = vand.u32 %v496, 4294901760
        %931 = vmatpush.msra.mxu0 %v930
        %v932 = vand.u32 %v493, 4294901760
        %933 = vmatpush.msra.mxu0 %v932
        %v934 = vand.u32 %v490, 4294901760
        %935 = vmatpush.msra.mxu0 %v934
        %v936 = vand.u32 %v487, 4294901760
        %937 = vmatpush.msra.mxu0 %v936
        %v938 = vand.u32 %v521, 4294901760
        %v939 = vsub.f32 %v521, %v938
        %v940 = vand.u32 %v939, 4294901760
        %941 = vmatmul.f32.gmra.mxu0 %v940
        %v942 = vpop.f32.mrf.mxu0
        %v943 = vadd.f32 %v911, %v942
        %944 = vdwg.mxu0
        %945 = vmatpush.msra.mxu0 0.0
        %946 = vmatpush.msra.mxu0 0.0
        %947 = vmatpush.msra.mxu0 0.0
        %948 = vmatpush.msra.mxu0 0.0
        %949 = vmatpush.msra.mxu0 0.0
        %950 = vmatpush.msra.mxu0 0.0
        %951 = vmatpush.msra.mxu0 0.0
        %v952 = vand.u32 %v511, 4294901760
        %v953 = vsub.f32 %v511, %v952
        %v954 = vand.u32 %v953, 4294901760
        %955 = vmatpush.msra.mxu0 %v954
        %v956 = vand.u32 %v508, 4294901760
        %v957 = vsub.f32 %v508, %v956
        %v958 = vand.u32 %v957, 4294901760
        %959 = vmatpush.msra.mxu0 %v958
        %v960 = vand.u32 %v505, 4294901760
        %v961 = vsub.f32 %v505, %v960
        %v962 = vand.u32 %v961, 4294901760
        %963 = vmatpush.msra.mxu0 %v962
        %v964 = vand.u32 %v502, 4294901760
        %v965 = vsub.f32 %v502, %v964
        %v966 = vand.u32 %v965, 4294901760
        %967 = vmatpush.msra.mxu0 %v966
        %v968 = vand.u32 %v499, 4294901760
        %v969 = vsub.f32 %v499, %v968
        %v970 = vand.u32 %v969, 4294901760
        %971 = vmatpush.msra.mxu0 %v970
        %v972 = vand.u32 %v496, 4294901760
        %v973 = vsub.f32 %v496, %v972
        %v974 = vand.u32 %v973, 4294901760
        %975 = vmatpush.msra.mxu0 %v974
        %v976 = vand.u32 %v493, 4294901760
        %v977 = vsub.f32 %v493, %v976
        %v978 = vand.u32 %v977, 4294901760
        %979 = vmatpush.msra.mxu0 %v978
        %v980 = vand.u32 %v490, 4294901760
        %v981 = vsub.f32 %v490, %v980
        %v982 = vand.u32 %v981, 4294901760
        %983 = vmatpush.msra.mxu0 %v982
        %v984 = vand.u32 %v487, 4294901760
        %v985 = vsub.f32 %v487, %v984
        %v986 = vand.u32 %v985, 4294901760
        %987 = vmatpush.msra.mxu0 %v986
        %v988 = vand.u32 %v521, 4294901760
        %989 = vmatmul.f32.gmra.mxu0 %v988
        %v990 = vpop.f32.mrf.mxu0
        %v991 = vadd.f32 %v943, %v990
        %992 = vdwg.mxu0
        %993 = vmatpush.msra.mxu0 0.0
        %994 = vmatpush.msra.mxu0 0.0
        %995 = vmatpush.msra.mxu0 0.0
        %996 = vmatpush.msra.mxu0 0.0
        %997 = vmatpush.msra.mxu0 0.0
        %998 = vmatpush.msra.mxu0 0.0
        %999 = vmatpush.msra.mxu0 0.0
        %v1000 = vand.u32 %v511, 4294901760
        %1001 = vmatpush.msra.mxu0 %v1000
        %v1002 = vand.u32 %v508, 4294901760
        %1003 = vmatpush.msra.mxu0 %v1002
        %v1004 = vand.u32 %v505, 4294901760
        %1005 = vmatpush.msra.mxu0 %v1004
        %v1006 = vand.u32 %v502, 4294901760
        %1007 = vmatpush.msra.mxu0 %v1006
        %v1008 = vand.u32 %v499, 4294901760
        %1009 = vmatpush.msra.mxu0 %v1008
        %v1010 = vand.u32 %v496, 4294901760
        %1011 = vmatpush.msra.mxu0 %v1010
        %v1012 = vand.u32 %v493, 4294901760
        %1013 = vmatpush.msra.mxu0 %v1012
        %v1014 = vand.u32 %v490, 4294901760
        %1015 = vmatpush.msra.mxu0 %v1014
        %v1016 = vand.u32 %v487, 4294901760
        %1017 = vmatpush.msra.mxu0 %v1016
        %v1018 = vand.u32 %v521, 4294901760
        %1019 = vmatmul.f32.gmra.mxu0 %v1018
        %v1020 = vpop.f32.mrf.mxu0
        %v1021 = vadd.f32 %v991, %v1020
        %1022 = vdwg.mxu0
        %1023 = vmatpush.msra.mxu0 0.0
        %1024 = vmatpush.msra.mxu0 0.0
        %1025 = vmatpush.msra.mxu0 0.0
        %1026 = vmatpush.msra.mxu0 0.0
        %1027 = vmatpush.msra.mxu0 0.0
        %1028 = vmatpush.msra.mxu0 0.0
        %1029 = vmatpush.msra.mxu0 0.0
        %v1030 = vand.u32 %v512, 4294901760
        %1031 = vmatpush.msra.mxu0 %v1030
        %v1032 = vand.u32 %v509, 4294901760
        %1033 = vmatpush.msra.mxu0 %v1032
        %v1034 = vand.u32 %v506, 4294901760
        %1035 = vmatpush.msra.mxu0 %v1034
        %v1036 = vand.u32 %v503, 4294901760
        %1037 = vmatpush.msra.mxu0 %v1036
        %v1038 = vand.u32 %v500, 4294901760
        %1039 = vmatpush.msra.mxu0 %v1038
        %v1040 = vand.u32 %v497, 4294901760
        %1041 = vmatpush.msra.mxu0 %v1040
        %v1042 = vand.u32 %v494, 4294901760
        %1043 = vmatpush.msra.mxu0 %v1042
        %v1044 = vand.u32 %v491, 4294901760
        %1045 = vmatpush.msra.mxu0 %v1044
        %v1046 = vand.u32 %v488, 4294901760
        %1047 = vmatpush.msra.mxu0 %v1046
        %v1048 = vand.u32 %v521, 4294901760
        %v1049 = vsub.f32 %v521, %v1048
        %v1050 = vand.u32 %v1049, 4294901760
        %v1051 = vsub.f32 %v1049, %v1050
        %v1052 = vand.u32 %v1051, 4294901760
        %1053 = vmatmul.f32.gmra.mxu0 %v1052
        %v1054 = vpop.f32.mrf.mxu0
        %v1055 = vadd.f32 %v517, %v1054
        %1056 = vdwg.mxu0
        %1057 = vmatpush.msra.mxu0 0.0
        %1058 = vmatpush.msra.mxu0 0.0
        %1059 = vmatpush.msra.mxu0 0.0
        %1060 = vmatpush.msra.mxu0 0.0
        %1061 = vmatpush.msra.mxu0 0.0
        %1062 = vmatpush.msra.mxu0 0.0
        %1063 = vmatpush.msra.mxu0 0.0
        %v1064 = vand.u32 %v512, 4294901760
        %v1065 = vsub.f32 %v512, %v1064
        %v1066 = vand.u32 %v1065, 4294901760
        %v1067 = vsub.f32 %v1065, %v1066
        %v1068 = vand.u32 %v1067, 4294901760
        %1069 = vmatpush.msra.mxu0 %v1068
        %v1070 = vand.u32 %v509, 4294901760
        %v1071 = vsub.f32 %v509, %v1070
        %v1072 = vand.u32 %v1071, 4294901760
        %v1073 = vsub.f32 %v1071, %v1072
        %v1074 = vand.u32 %v1073, 4294901760
        %1075 = vmatpush.msra.mxu0 %v1074
        %v1076 = vand.u32 %v506, 4294901760
        %v1077 = vsub.f32 %v506, %v1076
        %v1078 = vand.u32 %v1077, 4294901760
        %v1079 = vsub.f32 %v1077, %v1078
        %v1080 = vand.u32 %v1079, 4294901760
        %1081 = vmatpush.msra.mxu0 %v1080
        %v1082 = vand.u32 %v503, 4294901760
        %v1083 = vsub.f32 %v503, %v1082
        %v1084 = vand.u32 %v1083, 4294901760
        %v1085 = vsub.f32 %v1083, %v1084
        %v1086 = vand.u32 %v1085, 4294901760
        %1087 = vmatpush.msra.mxu0 %v1086
        %v1088 = vand.u32 %v500, 4294901760
        %v1089 = vsub.f32 %v500, %v1088
        %v1090 = vand.u32 %v1089, 4294901760
        %v1091 = vsub.f32 %v1089, %v1090
        %v1092 = vand.u32 %v1091, 4294901760
        %1093 = vmatpush.msra.mxu0 %v1092
        %v1094 = vand.u32 %v497, 4294901760
        %v1095 = vsub.f32 %v497, %v1094
        %v1096 = vand.u32 %v1095, 4294901760
        %v1097 = vsub.f32 %v1095, %v1096
        %v1098 = vand.u32 %v1097, 4294901760
        %1099 = vmatpush.msra.mxu0 %v1098
        %v1100 = vand.u32 %v494, 4294901760
        %v1101 = vsub.f32 %v494, %v1100
        %v1102 = vand.u32 %v1101, 4294901760
        %v1103 = vsub.f32 %v1101, %v1102
        %v1104 = vand.u32 %v1103, 4294901760
        %1105 = vmatpush.msra.mxu0 %v1104
        %v1106 = vand.u32 %v491, 4294901760
        %v1107 = vsub.f32 %v491, %v1106
        %v1108 = vand.u32 %v1107, 4294901760
        %v1109 = vsub.f32 %v1107, %v1108
        %v1110 = vand.u32 %v1109, 4294901760
        %1111 = vmatpush.msra.mxu0 %v1110
        %v1112 = vand.u32 %v488, 4294901760
        %v1113 = vsub.f32 %v488, %v1112
        %v1114 = vand.u32 %v1113, 4294901760
        %v1115 = vsub.f32 %v1113, %v1114
        %v1116 = vand.u32 %v1115, 4294901760
        %1117 = vmatpush.msra.mxu0 %v1116
        %v1118 = vand.u32 %v521, 4294901760
        %1119 = vmatmul.f32.gmra.mxu0 %v1118
        %v1120 = vpop.f32.mrf.mxu0
        %v1121 = vadd.f32 %v1055, %v1120
        %1122 = vdwg.mxu0
        %1123 = vmatpush.msra.mxu0 0.0
        %1124 = vmatpush.msra.mxu0 0.0
        %1125 = vmatpush.msra.mxu0 0.0
        %1126 = vmatpush.msra.mxu0 0.0
        %1127 = vmatpush.msra.mxu0 0.0
        %1128 = vmatpush.msra.mxu0 0.0
        %1129 = vmatpush.msra.mxu0 0.0
        %v1130 = vand.u32 %v512, 4294901760
        %v1131 = vsub.f32 %v512, %v1130
        %1132 = vmatpush.msra.mxu0 %v1131
        %v1133 = vand.u32 %v509, 4294901760
        %v1134 = vsub.f32 %v509, %v1133
        %1135 = vmatpush.msra.mxu0 %v1134
        %v1136 = vand.u32 %v506, 4294901760
        %v1137 = vsub.f32 %v506, %v1136
        %1138 = vmatpush.msra.mxu0 %v1137
        %v1139 = vand.u32 %v503, 4294901760
        %v1140 = vsub.f32 %v503, %v1139
        %1141 = vmatpush.msra.mxu0 %v1140
        %v1142 = vand.u32 %v500, 4294901760
        %v1143 = vsub.f32 %v500, %v1142
        %1144 = vmatpush.msra.mxu0 %v1143
        %v1145 = vand.u32 %v497, 4294901760
        %v1146 = vsub.f32 %v497, %v1145
        %1147 = vmatpush.msra.mxu0 %v1146
        %v1148 = vand.u32 %v494, 4294901760
        %v1149 = vsub.f32 %v494, %v1148
        %1150 = vmatpush.msra.mxu0 %v1149
        %v1151 = vand.u32 %v491, 4294901760
        %v1152 = vsub.f32 %v491, %v1151
        %1153 = vmatpush.msra.mxu0 %v1152
        %v1154 = vand.u32 %v488, 4294901760
        %v1155 = vsub.f32 %v488, %v1154
        %1156 = vmatpush.msra.mxu0 %v1155
        %v1157 = vand.u32 %v521, 4294901760
        %v1158 = vsub.f32 %v521, %v1157
        %1159 = vmatmul.f32.gmra.mxu0 %v1158
        %v1160 = vpop.f32.mrf.mxu0
        %v1161 = vadd.f32 %v1121, %v1160
        %1162 = vdwg.mxu0
        %1163 = vmatpush.msra.mxu0 0.0
        %1164 = vmatpush.msra.mxu0 0.0
        %1165 = vmatpush.msra.mxu0 0.0
        %1166 = vmatpush.msra.mxu0 0.0
        %1167 = vmatpush.msra.mxu0 0.0
        %1168 = vmatpush.msra.mxu0 0.0
        %1169 = vmatpush.msra.mxu0 0.0
        %v1170 = vand.u32 %v512, 4294901760
        %1171 = vmatpush.msra.mxu0 %v1170
        %v1172 = vand.u32 %v509, 4294901760
        %1173 = vmatpush.msra.mxu0 %v1172
        %v1174 = vand.u32 %v506, 4294901760
        %1175 = vmatpush.msra.mxu0 %v1174
        %v1176 = vand.u32 %v503, 4294901760
        %1177 = vmatpush.msra.mxu0 %v1176
        %v1178 = vand.u32 %v500, 4294901760
        %1179 = vmatpush.msra.mxu0 %v1178
        %v1180 = vand.u32 %v497, 4294901760
        %1181 = vmatpush.msra.mxu0 %v1180
        %v1182 = vand.u32 %v494, 4294901760
        %1183 = vmatpush.msra.mxu0 %v1182
        %v1184 = vand.u32 %v491, 4294901760
        %1185 = vmatpush.msra.mxu0 %v1184
        %v1186 = vand.u32 %v488, 4294901760
        %1187 = vmatpush.msra.mxu0 %v1186
        %v1188 = vand.u32 %v521, 4294901760
        %v1189 = vsub.f32 %v521, %v1188
        %v1190 = vand.u32 %v1189, 4294901760
        %1191 = vmatmul.f32.gmra.mxu0 %v1190
        %v1192 = vpop.f32.mrf.mxu0
        %v1193 = vadd.f32 %v1161, %v1192
        %1194 = vdwg.mxu0
        %1195 = vmatpush.msra.mxu0 0.0
        %1196 = vmatpush.msra.mxu0 0.0
        %1197 = vmatpush.msra.mxu0 0.0
        %1198 = vmatpush.msra.mxu0 0.0
        %1199 = vmatpush.msra.mxu0 0.0
        %1200 = vmatpush.msra.mxu0 0.0
        %1201 = vmatpush.msra.mxu0 0.0
        %v1202 = vand.u32 %v512, 4294901760
        %v1203 = vsub.f32 %v512, %v1202
        %v1204 = vand.u32 %v1203, 4294901760
        %1205 = vmatpush.msra.mxu0 %v1204
        %v1206 = vand.u32 %v509, 4294901760
        %v1207 = vsub.f32 %v509, %v1206
        %v1208 = vand.u32 %v1207, 4294901760
        %1209 = vmatpush.msra.mxu0 %v1208
        %v1210 = vand.u32 %v506, 4294901760
        %v1211 = vsub.f32 %v506, %v1210
        %v1212 = vand.u32 %v1211, 4294901760
        %1213 = vmatpush.msra.mxu0 %v1212
        %v1214 = vand.u32 %v503, 4294901760
        %v1215 = vsub.f32 %v503, %v1214
        %v1216 = vand.u32 %v1215, 4294901760
        %1217 = vmatpush.msra.mxu0 %v1216
        %v1218 = vand.u32 %v500, 4294901760
        %v1219 = vsub.f32 %v500, %v1218
        %v1220 = vand.u32 %v1219, 4294901760
        %1221 = vmatpush.msra.mxu0 %v1220
        %v1222 = vand.u32 %v497, 4294901760
        %v1223 = vsub.f32 %v497, %v1222
        %v1224 = vand.u32 %v1223, 4294901760
        %1225 = vmatpush.msra.mxu0 %v1224
        %v1226 = vand.u32 %v494, 4294901760
        %v1227 = vsub.f32 %v494, %v1226
        %v1228 = vand.u32 %v1227, 4294901760
        %1229 = vmatpush.msra.mxu0 %v1228
        %v1230 = vand.u32 %v491, 4294901760
        %v1231 = vsub.f32 %v491, %v1230
        %v1232 = vand.u32 %v1231, 4294901760
        %1233 = vmatpush.msra.mxu0 %v1232
        %v1234 = vand.u32 %v488, 4294901760
        %v1235 = vsub.f32 %v488, %v1234
        %v1236 = vand.u32 %v1235, 4294901760
        %1237 = vmatpush.msra.mxu0 %v1236
        %v1238 = vand.u32 %v521, 4294901760
        %1239 = vmatmul.f32.gmra.mxu0 %v1238
        %v1240 = vpop.f32.mrf.mxu0
        %v1241 = vadd.f32 %v1193, %v1240
        %1242 = vdwg.mxu0
        %1243 = vmatpush.msra.mxu0 0.0
        %1244 = vmatpush.msra.mxu0 0.0
        %1245 = vmatpush.msra.mxu0 0.0
        %1246 = vmatpush.msra.mxu0 0.0
        %1247 = vmatpush.msra.mxu0 0.0
        %1248 = vmatpush.msra.mxu0 0.0
        %1249 = vmatpush.msra.mxu0 0.0
        %v1250 = vand.u32 %v512, 4294901760
        %1251 = vmatpush.msra.mxu0 %v1250
        %v1252 = vand.u32 %v509, 4294901760
        %1253 = vmatpush.msra.mxu0 %v1252
        %v1254 = vand.u32 %v506, 4294901760
        %1255 = vmatpush.msra.mxu0 %v1254
        %v1256 = vand.u32 %v503, 4294901760
        %1257 = vmatpush.msra.mxu0 %v1256
        %v1258 = vand.u32 %v500, 4294901760
        %1259 = vmatpush.msra.mxu0 %v1258
        %v1260 = vand.u32 %v497, 4294901760
        %1261 = vmatpush.msra.mxu0 %v1260
        %v1262 = vand.u32 %v494, 4294901760
        %1263 = vmatpush.msra.mxu0 %v1262
        %v1264 = vand.u32 %v491, 4294901760
        %1265 = vmatpush.msra.mxu0 %v1264
        %v1266 = vand.u32 %v488, 4294901760
        %1267 = vmatpush.msra.mxu0 %v1266
        %v1268 = vand.u32 %v521, 4294901760
        %1269 = vmatmul.f32.gmra.mxu0 %v1268
        %v1270 = vpop.f32.mrf.mxu0
        %v1271 = vadd.f32 %v1241, %v1270
        %1272 = vdwg.mxu0
        %1273 = vst [vmem:[%s313] sm:$0xff] %v771
        %1274 = vst [vmem:[%s313 + $0x8] sm:$0xff] %v1021
        %1275 = vst [vmem:[%s313 + $0x10] sm:$0xff] %v1271
        %s1276 = sand.u32 %s144, 1
        %s1277 = scalar_lea.sflag [#allocation5], %s1276
        %s1278 = sand.u32 %s144, 1
        %s1279 = smul.addr %s1278, 24
        %s1280 = scalar_lea.vmem [#allocation10], %s1279
        // Predicated region
        $region53: #{tpu_custom_call.1} parent=35 // pred_check
          %p1281 = pneg %p154
        $region54: #{tpu_custom_call.1} parent=35 // pred_check_branch
          %1283 = sbr.rel (%p1281) target = $region56
        $region55: #{tpu_custom_call.1} parent=35 // pred_region
          %s1284 = smul.u32 3, %s25
          %1286 = vsyncadd %s1277, 0
          %s1287 = smul.addr %s24, 3
          %s1288 = sadd.s32 %s1284, %s1287
          %s1289 = smul.addr %s1288, 8
          %s1290 = scalar_lea.hbm %s4, %s1289
          %s1292 = sshll.u32 %s1280, 4
          %s1293 = int_to_ptr.vmem [resolvable:$true] %s1292
          %s1294 = sshll.u32 %s1290, 4
          %s1295 = int_to_ptr.hbm [resolvable:$true] %s1294
          %1297 = dma.vmem_to_hbm [thread:$0]  %s1293, 384, %s1295, %s1277
        $region56: #{tpu_custom_call.1} parent=35 // pred_fallthru
          _
      $region36: #{tpu_custom_call.1} parent=5 // pred_fallthru
        _
      %p1298 = scmp.le.s32.totalorder 2, %s15
      // Predicated region
      $region57: #{tpu_custom_call.1} parent=5 // pred_check
        %p1299 = pneg %p1298
      $region58: #{tpu_custom_call.1} parent=5 // pred_check_branch
        %1301 = sbr.rel (%p1299) target = $region60
      $region59: #{tpu_custom_call.1} parent=5 // pred_region
        %s1302 = ssub.s32 %s15, 2
        // Predicated region
        $region61: #{tpu_custom_call.1} parent=59 // pred_check
          %p1303 = pneg %p160
        $region62: #{tpu_custom_call.1} parent=59 // pred_check_branch
          %1305 = sbr.rel (%p1303) target = $region64
        $region63: #{tpu_custom_call.1} parent=59 // pred_region
          %s1306 = sand.u32 %s145, 1
          %s1307 = scalar_lea.sflag [#allocation5], %s1306
          %s1308 = sand.u32 %s145, 1
          %s1309 = smul.addr %s1308, 24
          %s1310 = scalar_lea.vmem [#allocation10], %s1309
          %1312 = dma.done %s1307, 384
        $region64: #{tpu_custom_call.1} parent=59 // pred_fallthru
          _
      $region60: #{tpu_custom_call.1} parent=5 // pred_fallthru
        _
    $region6: #{tpu_custom_call.1} parent=1 // loop_footer
      %s19 = sadd.s32 1, %s15
    $region7: #{tpu_custom_call.1} parent=1 // loop_footer_branch
      %14 = sbr.rel target = $region3
    $region8: #{tpu_custom_call.1} parent=1 // loop_exit
      _
    %1313 = vsyncpa [#allocation4], 1
    %s1314 = scalar_lea.sflag [#allocation4], 1
    %1315 = vsyncpa %s1314, 1
    %1316 = vsyncpa [#allocation7], 1
    %1317 = vsyncpa [#allocation5], 1
    %s1318 = scalar_lea.sflag [#allocation5], 1
    %1319 = vsyncpa %s1318, 1

</llo_original>
